<compile_context>
chip_gen: v7x
topology: tpu7x:2x2x1
jax: 0.10.0
libtpu: 0.0.40
codegen_flags: <defaults>
</compile_context>

<pallas_src>
import functools

import jax
import jax.numpy as jnp
from jax.experimental import pallas as pl
from jax.experimental.pallas import tpu as pltpu


# ----------------------------------------------------------------------------
# Kernel
# ----------------------------------------------------------------------------
def _rec_rs_kernel(
    # inputs
    x_ref,        # (T_CHUNK, BB, O)  targets for this time chunk / batch block
    h0_ref,       # (BB, S)           initial hidden state (batch block)
    w_r_t_ref,    # (S, S)            pre-transposed recurrent weights (w_r.T)
    w_o_t_ref,    # (S, O)            pre-transposed output weights   (w_o.T)
    b_r_ref,      # (1, S)
    b_o_ref,      # (1, O)
    # outputs
    err_ref,      # (T_CHUNK, BB, O)  prediction errors for this chunk
    # scratch (persists across grid steps)
    h_scr,        # (BB, S)           hidden-state carry across time chunks
    *,
    tau_h: float,
):
    t_blk = pl.program_id(1)

    # Initialize the carry at the first time chunk of each batch block.
    @pl.when(t_blk == 0)
    def _():
        h_scr[...] = h0_ref[...].astype(jnp.float32)

    t_chunk, bb, out_dim = err_ref.shape
    states_dim = h_scr.shape[-1]

    # Hoisted once per grid step: weight loads + bias broadcasts are constant
    # across the inner time loop.
    w_r_t = w_r_t_ref[...]                                      # (S, S)
    w_o_t = w_o_t_ref[...]                                      # (S, O)
    b_r = jnp.broadcast_to(b_r_ref[...], (bb, states_dim)).astype(jnp.float32)
    b_o = jnp.broadcast_to(b_o_ref[...], (bb, out_dim)).astype(jnp.float32)

    decay = jnp.float32(1.0 - 1.0 / tau_h)
    gain = jnp.float32(1.0 / tau_h)
    mm_dtype = w_r_t.dtype          # f32 or bf16 (MXU operands only)

    def step(t, old_h):
        # MXU matmuls: operands in mm_dtype, f32 accumulation.
        rec = jnp.dot(jnp.tanh(old_h).astype(mm_dtype), w_r_t,
                      preferred_element_type=jnp.float32)        # (BB, S)
        # Elementwise recurrence stays in f32 (VPU/EUP).
        h = decay * old_h + gain * (rec + b_r)                   # (BB, S)
        x_pred = jnp.dot(jnp.tanh(h).astype(mm_dtype), w_o_t,
                         preferred_element_type=jnp.float32) + b_o  # (BB, O)
        err_ref[t] = (x_pred - x_ref[t].astype(jnp.float32)).astype(err_ref.dtype)
        return h

    # Recurrence over the chunk: h carried in vregs, loop fully unrolled so
    # the LLO scheduler sees the whole straight-line body.
    h_fin = jax.lax.fori_loop(0, t_chunk, step, h_scr[...], unroll=True)

    # Carry to the next time chunk (single VMEM write per chunk).
    h_scr[...] = h_fin


# ----------------------------------------------------------------------------
# Wrapper
# ----------------------------------------------------------------------------
def rec_rs_forward(x, h_init, w_r, b_r, w_o, b_o, *, tau_h,
                   t_chunk=None, batch_block=None,
                   matmul_dtype=jnp.float32):
    """Returns `errors` of shape (seq_len, batch, output_dim), matching the
    PyTorch module's forward() return value.

    t_chunk:     number of time steps processed per grid step (must divide
                 seq_len).  Default: the whole sequence in one grid step.
    batch_block: batch tile for the "parallel" grid axis (must divide batch;
                 if < batch it must be a multiple of 8).  Default: full batch.
    matmul_dtype: dtype of the MXU operands (weights + matmul LHS).  bf16
                 halves MXU passes on v5e/v6e while accumulation and all
                 elementwise math stay f32.
    """
    seq_len, batch, output_dim = x.shape
    states_dim = w_r.shape[0]

    if t_chunk is None:
        t_chunk = seq_len
    assert seq_len % t_chunk == 0, "t_chunk must divide seq_len"
    if batch_block is None:
        batch_block = batch
    assert batch % batch_block == 0, "batch_block must divide batch"

    n_batch_blocks = batch // batch_block
    n_time_chunks = seq_len // t_chunk

    # Pre-transpose constant weights once in the wrapper (no in-kernel .T) and
    # cast the MXU operands once.
    w_r_t = jnp.asarray(w_r).T.astype(matmul_dtype)          # (S, S)
    w_o_t = jnp.asarray(w_o).T.astype(matmul_dtype)          # (S, O)
    b_r2 = jnp.asarray(b_r).reshape(1, states_dim).astype(jnp.float32)
    b_o2 = jnp.asarray(b_o).reshape(1, output_dim).astype(jnp.float32)

    kernel = functools.partial(_rec_rs_kernel, tau_h=float(tau_h))

    grid_spec = pltpu.PrefetchScalarGridSpec(
        num_scalar_prefetch=0,
        grid=(n_batch_blocks, n_time_chunks),
        in_specs=[
            pl.BlockSpec((t_chunk, batch_block, output_dim),
                         lambda b, t: (t, b, 0)),                      # x
            pl.BlockSpec((batch_block, states_dim), lambda b, t: (b, 0)),  # h_init
            pl.BlockSpec((states_dim, states_dim), lambda b, t: (0, 0)),   # w_r.T
            pl.BlockSpec((states_dim, output_dim), lambda b, t: (0, 0)),   # w_o.T
            pl.BlockSpec((1, states_dim), lambda b, t: (0, 0)),            # b_r
            pl.BlockSpec((1, output_dim), lambda b, t: (0, 0)),            # b_o
        ],
        out_specs=pl.BlockSpec((t_chunk, batch_block, output_dim),
                               lambda b, t: (t, b, 0)),
        scratch_shapes=[
            pltpu.VMEM((batch_block, states_dim), jnp.float32),  # h carry
        ],
    )

    return pl.pallas_call(
        kernel,
        out_shape=jax.ShapeDtypeStruct((seq_len, batch, output_dim), jnp.float32),
        grid_spec=grid_spec,
        compiler_params=pltpu.CompilerParams(
            # batch blocks are independent (megacore / v7x 2 TCs);
            # time chunks carry state and must stay sequential.
            dimension_semantics=("parallel", "arbitrary"),
            # Budget VMEM explicitly (v7x has 64 MiB physical, 32 MiB scoped
            # default); keeps larger t_chunk choices viable everywhere.
            vmem_limit_bytes=32 * 1024 * 1024,
        ),
    )(x, jnp.asarray(h_init, jnp.float32), w_r_t, w_o_t, b_r2, b_o2)


# ----------------------------------------------------------------------------
# Pure-JAX reference (mirrors the PyTorch forward loop), for verification.
# ----------------------------------------------------------------------------
def rec_rs_forward_ref(x, h_init, w_r, b_r, w_o, b_o, *, tau_h):
    def step(old_h, xt):
        h = (1.0 - 1.0 / tau_h) * old_h + (1.0 / tau_h) * (
            jnp.tanh(old_h) @ w_r.T + b_r)
        x_pred = jnp.tanh(h) @ w_o.T + b_o
        return h, x_pred - xt

    _, errors = jax.lax.scan(step, h_init, x)
    return errors


# ----------------------------------------------------------------------------
# Demo / correctness check
# ----------------------------------------------------------------------------
if __name__ == "__main__":
    # Small shapes consistent with the module.
    seq_len, batch = 8, 4
    states_dim, output_dim = 32, 16
    tau_h = 2.0

    key = jax.random.PRNGKey(0)
    k_wo, k_bo, k_wr, k_br, k_x, k_h = jax.random.split(key, 6)

    # Parameter init mirroring the module's __init__ scaling.
    w_o = jax.random.normal(k_wo, (output_dim, states_dim), jnp.float32) / states_dim
    b_o = jax.random.normal(k_bo, (output_dim,), jnp.float32) / 10.0
    w_r = jax.random.normal(k_wr, (states_dim, states_dim), jnp.float32) / states_dim
    b_r = jax.random.normal(k_br, (states_dim,), jnp.float32) / 10.0

    x = jax.random.normal(k_x, (seq_len, batch, output_dim), jnp.float32)
    h_init = jax.random.normal(k_h, (batch, states_dim), jnp.float32)

    ref = jax.block_until_ready(
        rec_rs_forward_ref(x, h_init, w_r, b_r, w_o, b_o, tau_h=tau_h))

    # (1) Whole sequence in a single grid step: recurrence fully in-kernel,
    #     hidden-state carry stays in vregs.
    errors = jax.block_until_ready(
        rec_rs_forward(x, h_init, w_r, b_r, w_o, b_o, tau_h=tau_h))
    assert errors.shape == (seq_len, batch, output_dim)
    assert jnp.allclose(errors, ref, atol=1e-4, rtol=1e-4), float(
        jnp.max(jnp.abs(errors - ref)))

    # (2) Two time chunks: exercises the VMEM h-carry across grid steps.
    errors_chunked = jax.block_until_ready(
        rec_rs_forward(x, h_init, w_r, b_r, w_o, b_o, tau_h=tau_h, t_chunk=4))
    assert jnp.allclose(errors_chunked, ref, atol=1e-4, rtol=1e-4), float(
        jnp.max(jnp.abs(errors_chunked - ref)))

    # (3) bf16 MXU operands with f32 accumulation / elementwise (v5e & v6e lever).
    errors_bf16 = jax.block_until_ready(
        rec_rs_forward(x, h_init, w_r, b_r, w_o, b_o, tau_h=tau_h,
                       matmul_dtype=jnp.bfloat16))
    assert jnp.allclose(errors_bf16, ref, atol=3e-2, rtol=3e-2), float(
        jnp.max(jnp.abs(errors_bf16 - ref)))

    print("KERNEL_OK")
</pallas_src>

<mosaic_0001>
module attributes {stable_mosaic.version = 11 : i64} {
  func.func @_rec_rs_kernel(%arg0: i32, %arg1: i32, %arg2: memref<8x4x16xf32, #tpu.memory_space<vmem>>, %arg3: memref<4x32xf32, #tpu.memory_space<vmem>>, %arg4: memref<32x32xf32, #tpu.memory_space<vmem>>, %arg5: memref<32x16xf32, #tpu.memory_space<vmem>>, %arg6: memref<1x32xf32, #tpu.memory_space<vmem>>, %arg7: memref<1x16xf32, #tpu.memory_space<vmem>>, %arg8: memref<8x4x16xf32, #tpu.memory_space<vmem>>, %arg9: memref<4x32xf32, #tpu.memory_space<vmem>>) attributes {dimension_semantics = [#tpu.dimension_semantics<parallel>, #tpu.dimension_semantics<arbitrary>], iteration_bounds = array<i64: 1, 1>, scalar_prefetch = 0 : i64, scratch_operands = 1 : i64, tpu.core_type = #tpu.core_type<tc>, window_params = [{transform_indices = @transform_0, window_bounds = array<i64: 8, 4, 16>}, {transform_indices = @transform_1, window_bounds = array<i64: 4, 32>}, {pipeline_mode = #tpu.pipeline_mode<synchronous>, transform_indices = @transform_2, window_bounds = array<i64: 32, 32>}, {pipeline_mode = #tpu.pipeline_mode<synchronous>, transform_indices = @transform_3, window_bounds = array<i64: 32, 16>}, {pipeline_mode = #tpu.pipeline_mode<synchronous>, transform_indices = @transform_4, window_bounds = array<i64: 1, 32>}, {pipeline_mode = #tpu.pipeline_mode<synchronous>, transform_indices = @transform_5, window_bounds = array<i64: 1, 16>}, {transform_indices = @transform_6, window_bounds = array<i64: 8, 4, 16>}]} {
    %c0_i32 = arith.constant 0 : i32
    %0 = arith.cmpi eq, %arg1, %c0_i32 : i32
    %1 = arith.extui %0 : i1 to i32
    %c0_i32_0 = arith.constant 0 : i32
    %2 = arith.cmpi ne, %1, %c0_i32_0 : i32
    scf.if %2 {
      %c0_62 = arith.constant 0 : index
      %c0_63 = arith.constant 0 : index
      %165 = vector.load %arg3[%c0_62, %c0_63] : memref<4x32xf32, #tpu.memory_space<vmem>>, vector<4x32xf32>
      %c0_64 = arith.constant 0 : index
      %c0_65 = arith.constant 0 : index
      %166 = vector.load %arg9[%c0_64, %c0_65] : memref<4x32xf32, #tpu.memory_space<vmem>>, vector<4x32xf32>
      tpu.vector_store %arg9[%c0_64, %c0_65], %165 {strides = array<i32>} : memref<4x32xf32, #tpu.memory_space<vmem>>, vector<4x32xf32>,
    } else {
    }
    %c0 = arith.constant 0 : index
    %c0_1 = arith.constant 0 : index
    %3 = vector.load %arg4[%c0, %c0_1] : memref<32x32xf32, #tpu.memory_space<vmem>>, vector<32x32xf32>
    %c0_2 = arith.constant 0 : index
    %c0_3 = arith.constant 0 : index
    %4 = vector.load %arg5[%c0_2, %c0_3] : memref<32x16xf32, #tpu.memory_space<vmem>>, vector<32x16xf32>
    %c0_4 = arith.constant 0 : index
    %c0_5 = arith.constant 0 : index
    %5 = vector.load %arg6[%c0_4, %c0_5] : memref<1x32xf32, #tpu.memory_space<vmem>>, vector<1x32xf32>
    %6 = vector.shape_cast %5 : vector<1x32xf32> to vector<1x32xf32>
    %7 = vector.broadcast %6 : vector<1x32xf32> to vector<4x32xf32>
    %c0_6 = arith.constant 0 : index
    %c0_7 = arith.constant 0 : index
    %8 = vector.load %arg7[%c0_6, %c0_7] : memref<1x16xf32, #tpu.memory_space<vmem>>, vector<1x16xf32>
    %9 = vector.shape_cast %8 : vector<1x16xf32> to vector<1x16xf32>
    %10 = vector.broadcast %9 : vector<1x16xf32> to vector<4x16xf32>
    %c0_8 = arith.constant 0 : index
    %c0_9 = arith.constant 0 : index
    %11 = vector.load %arg9[%c0_8, %c0_9] : memref<4x32xf32, #tpu.memory_space<vmem>>, vector<4x32xf32>
    %cst = arith.constant 5.000000e-01 : f32
    %cst_10 = arith.constant 5.000000e-01 : f32
    %c0_i32_11 = arith.constant 0 : i32
    %12 = math.tanh %11 : vector<4x32xf32>
    %cst_12 = arith.constant dense<0.000000e+00> : vector<4x32xf32>
    %13 = tpu.matmul %12, %3, %cst_12 {dimension_numbers = #tpu.dot_dimension_numbers<[1], [0], [0], [1], [0, 0, 1, 1], [], []>} : vector<4x32xf32>, vector<32x32xf32>, vector<4x32xf32> -> vector<4x32xf32>
    %14 = vector.broadcast %cst : f32 to vector<4x32xf32>
    %15 = arith.mulf %14, %11 : vector<4x32xf32>
    %16 = arith.addf %13, %7 : vector<4x32xf32>
    %17 = vector.broadcast %cst_10 : f32 to vector<4x32xf32>
    %18 = arith.mulf %17, %16 : vector<4x32xf32>
    %19 = arith.addf %15, %18 : vector<4x32xf32>
    %20 = math.tanh %19 : vector<4x32xf32>
    %cst_13 = arith.constant dense<0.000000e+00> : vector<4x16xf32>
    %21 = tpu.matmul %20, %4, %cst_13 {dimension_numbers = #tpu.dot_dimension_numbers<[1], [0], [0], [1], [0, 0, 1, 1], [], []>} : vector<4x32xf32>, vector<32x16xf32>, vector<4x16xf32> -> vector<4x16xf32>
    %22 = arith.addf %21, %10 : vector<4x16xf32>
    %23 = arith.index_cast %c0_i32_11 : i32 to index
    %c0_14 = arith.constant 0 : index
    %c0_15 = arith.constant 0 : index
    %24 = vector.load %arg2[%23, %c0_14, %c0_15] : memref<8x4x16xf32, #tpu.memory_space<vmem>>, vector<1x4x16xf32>
    %25 = vector.shape_cast %24 : vector<1x4x16xf32> to vector<4x16xf32>
    %26 = arith.subf %22, %25 : vector<4x16xf32>
    %27 = arith.index_cast %c0_i32_11 : i32 to index
    %c0_16 = arith.constant 0 : index
    %c0_17 = arith.constant 0 : index
    %28 = vector.load %arg8[%27, %c0_16, %c0_17] : memref<8x4x16xf32, #tpu.memory_space<vmem>>, vector<1x4x16xf32>
    %29 = vector.shape_cast %28 : vector<1x4x16xf32> to vector<4x16xf32>
    %30 = vector.shape_cast %26 : vector<4x16xf32> to vector<1x4x16xf32>
    tpu.vector_store %arg8[%27, %c0_16, %c0_17], %30 {strides = array<i32>} : memref<8x4x16xf32, #tpu.memory_space<vmem>>, vector<1x4x16xf32>,
    %c1_i32 = arith.constant 1 : i32
    %31 = math.tanh %19 : vector<4x32xf32>
    %cst_18 = arith.constant dense<0.000000e+00> : vector<4x32xf32>
    %32 = tpu.matmul %31, %3, %cst_18 {dimension_numbers = #tpu.dot_dimension_numbers<[1], [0], [0], [1], [0, 0, 1, 1], [], []>} : vector<4x32xf32>, vector<32x32xf32>, vector<4x32xf32> -> vector<4x32xf32>
    %33 = vector.broadcast %cst : f32 to vector<4x32xf32>
    %34 = arith.mulf %33, %19 : vector<4x32xf32>
    %35 = arith.addf %32, %7 : vector<4x32xf32>
    %36 = vector.broadcast %cst_10 : f32 to vector<4x32xf32>
    %37 = arith.mulf %36, %35 : vector<4x32xf32>
    %38 = arith.addf %34, %37 : vector<4x32xf32>
    %39 = math.tanh %38 : vector<4x32xf32>
    %cst_19 = arith.constant dense<0.000000e+00> : vector<4x16xf32>
    %40 = tpu.matmul %39, %4, %cst_19 {dimension_numbers = #tpu.dot_dimension_numbers<[1], [0], [0], [1], [0, 0, 1, 1], [], []>} : vector<4x32xf32>, vector<32x16xf32>, vector<4x16xf32> -> vector<4x16xf32>
    %41 = arith.addf %40, %10 : vector<4x16xf32>
    %42 = arith.index_cast %c1_i32 : i32 to index
    %c0_20 = arith.constant 0 : index
    %c0_21 = arith.constant 0 : index
    %43 = vector.load %arg2[%42, %c0_20, %c0_21] : memref<8x4x16xf32, #tpu.memory_space<vmem>>, vector<1x4x16xf32>
    %44 = vector.shape_cast %43 : vector<1x4x16xf32> to vector<4x16xf32>
    %45 = arith.subf %41, %44 : vector<4x16xf32>
    %46 = arith.index_cast %c1_i32 : i32 to index
    %c0_22 = arith.constant 0 : index
    %c0_23 = arith.constant 0 : index
    %47 = vector.load %arg8[%46, %c0_22, %c0_23] : memref<8x4x16xf32, #tpu.memory_space<vmem>>, vector<1x4x16xf32>
    %48 = vector.shape_cast %47 : vector<1x4x16xf32> to vector<4x16xf32>
    %49 = vector.shape_cast %45 : vector<4x16xf32> to vector<1x4x16xf32>
    tpu.vector_store %arg8[%46, %c0_22, %c0_23], %49 {strides = array<i32>} : memref<8x4x16xf32, #tpu.memory_space<vmem>>, vector<1x4x16xf32>,
    %c2_i32 = arith.constant 2 : i32
    %50 = math.tanh %38 : vector<4x32xf32>
    %cst_24 = arith.constant dense<0.000000e+00> : vector<4x32xf32>
    %51 = tpu.matmul %50, %3, %cst_24 {dimension_numbers = #tpu.dot_dimension_numbers<[1], [0], [0], [1], [0, 0, 1, 1], [], []>} : vector<4x32xf32>, vector<32x32xf32>, vector<4x32xf32> -> vector<4x32xf32>
    %52 = vector.broadcast %cst : f32 to vector<4x32xf32>
    %53 = arith.mulf %52, %38 : vector<4x32xf32>
    %54 = arith.addf %51, %7 : vector<4x32xf32>
    %55 = vector.broadcast %cst_10 : f32 to vector<4x32xf32>
    %56 = arith.mulf %55, %54 : vector<4x32xf32>
    %57 = arith.addf %53, %56 : vector<4x32xf32>
    %58 = math.tanh %57 : vector<4x32xf32>
    %cst_25 = arith.constant dense<0.000000e+00> : vector<4x16xf32>
    %59 = tpu.matmul %58, %4, %cst_25 {dimension_numbers = #tpu.dot_dimension_numbers<[1], [0], [0], [1], [0, 0, 1, 1], [], []>} : vector<4x32xf32>, vector<32x16xf32>, vector<4x16xf32> -> vector<4x16xf32>
    %60 = arith.addf %59, %10 : vector<4x16xf32>
    %61 = arith.index_cast %c2_i32 : i32 to index
    %c0_26 = arith.constant 0 : index
    %c0_27 = arith.constant 0 : index
    %62 = vector.load %arg2[%61, %c0_26, %c0_27] : memref<8x4x16xf32, #tpu.memory_space<vmem>>, vector<1x4x16xf32>
    %63 = vector.shape_cast %62 : vector<1x4x16xf32> to vector<4x16xf32>
    %64 = arith.subf %60, %63 : vector<4x16xf32>
    %65 = arith.index_cast %c2_i32 : i32 to index
    %c0_28 = arith.constant 0 : index
    %c0_29 = arith.constant 0 : index
    %66 = vector.load %arg8[%65, %c0_28, %c0_29] : memref<8x4x16xf32, #tpu.memory_space<vmem>>, vector<1x4x16xf32>
    %67 = vector.shape_cast %66 : vector<1x4x16xf32> to vector<4x16xf32>
    %68 = vector.shape_cast %64 : vector<4x16xf32> to vector<1x4x16xf32>
    tpu.vector_store %arg8[%65, %c0_28, %c0_29], %68 {strides = array<i32>} : memref<8x4x16xf32, #tpu.memory_space<vmem>>, vector<1x4x16xf32>,
    %c3_i32 = arith.constant 3 : i32
    %69 = math.tanh %57 : vector<4x32xf32>
    %cst_30 = arith.constant dense<0.000000e+00> : vector<4x32xf32>
    %70 = tpu.matmul %69, %3, %cst_30 {dimension_numbers = #tpu.dot_dimension_numbers<[1], [0], [0], [1], [0, 0, 1, 1], [], []>} : vector<4x32xf32>, vector<32x32xf32>, vector<4x32xf32> -> vector<4x32xf32>
    %71 = vector.broadcast %cst : f32 to vector<4x32xf32>
    %72 = arith.mulf %71, %57 : vector<4x32xf32>
    %73 = arith.addf %70, %7 : vector<4x32xf32>
    %74 = vector.broadcast %cst_10 : f32 to vector<4x32xf32>
    %75 = arith.mulf %74, %73 : vector<4x32xf32>
    %76 = arith.addf %72, %75 : vector<4x32xf32>
    %77 = math.tanh %76 : vector<4x32xf32>
    %cst_31 = arith.constant dense<0.000000e+00> : vector<4x16xf32>
    %78 = tpu.matmul %77, %4, %cst_31 {dimension_numbers = #tpu.dot_dimension_numbers<[1], [0], [0], [1], [0, 0, 1, 1], [], []>} : vector<4x32xf32>, vector<32x16xf32>, vector<4x16xf32> -> vector<4x16xf32>
    %79 = arith.addf %78, %10 : vector<4x16xf32>
    %80 = arith.index_cast %c3_i32 : i32 to index
    %c0_32 = arith.constant 0 : index
    %c0_33 = arith.constant 0 : index
    %81 = vector.load %arg2[%80, %c0_32, %c0_33] : memref<8x4x16xf32, #tpu.memory_space<vmem>>, vector<1x4x16xf32>
    %82 = vector.shape_cast %81 : vector<1x4x16xf32> to vector<4x16xf32>
    %83 = arith.subf %79, %82 : vector<4x16xf32>
    %84 = arith.index_cast %c3_i32 : i32 to index
    %c0_34 = arith.constant 0 : index
    %c0_35 = arith.constant 0 : index
    %85 = vector.load %arg8[%84, %c0_34, %c0_35] : memref<8x4x16xf32, #tpu.memory_space<vmem>>, vector<1x4x16xf32>
    %86 = vector.shape_cast %85 : vector<1x4x16xf32> to vector<4x16xf32>
    %87 = vector.shape_cast %83 : vector<4x16xf32> to vector<1x4x16xf32>
    tpu.vector_store %arg8[%84, %c0_34, %c0_35], %87 {strides = array<i32>} : memref<8x4x16xf32, #tpu.memory_space<vmem>>, vector<1x4x16xf32>,
    %c4_i32 = arith.constant 4 : i32
    %88 = math.tanh %76 : vector<4x32xf32>
    %cst_36 = arith.constant dense<0.000000e+00> : vector<4x32xf32>
    %89 = tpu.matmul %88, %3, %cst_36 {dimension_numbers = #tpu.dot_dimension_numbers<[1], [0], [0], [1], [0, 0, 1, 1], [], []>} : vector<4x32xf32>, vector<32x32xf32>, vector<4x32xf32> -> vector<4x32xf32>
    %90 = vector.broadcast %cst : f32 to vector<4x32xf32>
    %91 = arith.mulf %90, %76 : vector<4x32xf32>
    %92 = arith.addf %89, %7 : vector<4x32xf32>
    %93 = vector.broadcast %cst_10 : f32 to vector<4x32xf32>
    %94 = arith.mulf %93, %92 : vector<4x32xf32>
    %95 = arith.addf %91, %94 : vector<4x32xf32>
    %96 = math.tanh %95 : vector<4x32xf32>
    %cst_37 = arith.constant dense<0.000000e+00> : vector<4x16xf32>
    %97 = tpu.matmul %96, %4, %cst_37 {dimension_numbers = #tpu.dot_dimension_numbers<[1], [0], [0], [1], [0, 0, 1, 1], [], []>} : vector<4x32xf32>, vector<32x16xf32>, vector<4x16xf32> -> vector<4x16xf32>
    %98 = arith.addf %97, %10 : vector<4x16xf32>
    %99 = arith.index_cast %c4_i32 : i32 to index
    %c0_38 = arith.constant 0 : index
    %c0_39 = arith.constant 0 : index
    %100 = vector.load %arg2[%99, %c0_38, %c0_39] : memref<8x4x16xf32, #tpu.memory_space<vmem>>, vector<1x4x16xf32>
    %101 = vector.shape_cast %100 : vector<1x4x16xf32> to vector<4x16xf32>
    %102 = arith.subf %98, %101 : vector<4x16xf32>
    %103 = arith.index_cast %c4_i32 : i32 to index
    %c0_40 = arith.constant 0 : index
    %c0_41 = arith.constant 0 : index
    %104 = vector.load %arg8[%103, %c0_40, %c0_41] : memref<8x4x16xf32, #tpu.memory_space<vmem>>, vector<1x4x16xf32>
    %105 = vector.shape_cast %104 : vector<1x4x16xf32> to vector<4x16xf32>
    %106 = vector.shape_cast %102 : vector<4x16xf32> to vector<1x4x16xf32>
    tpu.vector_store %arg8[%103, %c0_40, %c0_41], %106 {strides = array<i32>} : memref<8x4x16xf32, #tpu.memory_space<vmem>>, vector<1x4x16xf32>,
    %c5_i32 = arith.constant 5 : i32
    %107 = math.tanh %95 : vector<4x32xf32>
    %cst_42 = arith.constant dense<0.000000e+00> : vector<4x32xf32>
    %108 = tpu.matmul %107, %3, %cst_42 {dimension_numbers = #tpu.dot_dimension_numbers<[1], [0], [0], [1], [0, 0, 1, 1], [], []>} : vector<4x32xf32>, vector<32x32xf32>, vector<4x32xf32> -> vector<4x32xf32>
    %109 = vector.broadcast %cst : f32 to vector<4x32xf32>
    %110 = arith.mulf %109, %95 : vector<4x32xf32>
    %111 = arith.addf %108, %7 : vector<4x32xf32>
    %112 = vector.broadcast %cst_10 : f32 to vector<4x32xf32>
    %113 = arith.mulf %112, %111 : vector<4x32xf32>
    %114 = arith.addf %110, %113 : vector<4x32xf32>
    %115 = math.tanh %114 : vector<4x32xf32>
    %cst_43 = arith.constant dense<0.000000e+00> : vector<4x16xf32>
    %116 = tpu.matmul %115, %4, %cst_43 {dimension_numbers = #tpu.dot_dimension_numbers<[1], [0], [0], [1], [0, 0, 1, 1], [], []>} : vector<4x32xf32>, vector<32x16xf32>, vector<4x16xf32> -> vector<4x16xf32>
    %117 = arith.addf %116, %10 : vector<4x16xf32>
    %118 = arith.index_cast %c5_i32 : i32 to index
    %c0_44 = arith.constant 0 : index
    %c0_45 = arith.constant 0 : index
    %119 = vector.load %arg2[%118, %c0_44, %c0_45] : memref<8x4x16xf32, #tpu.memory_space<vmem>>, vector<1x4x16xf32>
    %120 = vector.shape_cast %119 : vector<1x4x16xf32> to vector<4x16xf32>
    %121 = arith.subf %117, %120 : vector<4x16xf32>
    %122 = arith.index_cast %c5_i32 : i32 to index
    %c0_46 = arith.constant 0 : index
    %c0_47 = arith.constant 0 : index
    %123 = vector.load %arg8[%122, %c0_46, %c0_47] : memref<8x4x16xf32, #tpu.memory_space<vmem>>, vector<1x4x16xf32>
    %124 = vector.shape_cast %123 : vector<1x4x16xf32> to vector<4x16xf32>
    %125 = vector.shape_cast %121 : vector<4x16xf32> to vector<1x4x16xf32>
    tpu.vector_store %arg8[%122, %c0_46, %c0_47], %125 {strides = array<i32>} : memref<8x4x16xf32, #tpu.memory_space<vmem>>, vector<1x4x16xf32>,
    %c6_i32 = arith.constant 6 : i32
    %126 = math.tanh %114 : vector<4x32xf32>
    %cst_48 = arith.constant dense<0.000000e+00> : vector<4x32xf32>
    %127 = tpu.matmul %126, %3, %cst_48 {dimension_numbers = #tpu.dot_dimension_numbers<[1], [0], [0], [1], [0, 0, 1, 1], [], []>} : vector<4x32xf32>, vector<32x32xf32>, vector<4x32xf32> -> vector<4x32xf32>
    %128 = vector.broadcast %cst : f32 to vector<4x32xf32>
    %129 = arith.mulf %128, %114 : vector<4x32xf32>
    %130 = arith.addf %127, %7 : vector<4x32xf32>
    %131 = vector.broadcast %cst_10 : f32 to vector<4x32xf32>
    %132 = arith.mulf %131, %130 : vector<4x32xf32>
    %133 = arith.addf %129, %132 : vector<4x32xf32>
    %134 = math.tanh %133 : vector<4x32xf32>
    %cst_49 = arith.constant dense<0.000000e+00> : vector<4x16xf32>
    %135 = tpu.matmul %134, %4, %cst_49 {dimension_numbers = #tpu.dot_dimension_numbers<[1], [0], [0], [1], [0, 0, 1, 1], [], []>} : vector<4x32xf32>, vector<32x16xf32>, vector<4x16xf32> -> vector<4x16xf32>
    %136 = arith.addf %135, %10 : vector<4x16xf32>
    %137 = arith.index_cast %c6_i32 : i32 to index
    %c0_50 = arith.constant 0 : index
    %c0_51 = arith.constant 0 : index
    %138 = vector.load %arg2[%137, %c0_50, %c0_51] : memref<8x4x16xf32, #tpu.memory_space<vmem>>, vector<1x4x16xf32>
    %139 = vector.shape_cast %138 : vector<1x4x16xf32> to vector<4x16xf32>
    %140 = arith.subf %136, %139 : vector<4x16xf32>
    %141 = arith.index_cast %c6_i32 : i32 to index
    %c0_52 = arith.constant 0 : index
    %c0_53 = arith.constant 0 : index
    %142 = vector.load %arg8[%141, %c0_52, %c0_53] : memref<8x4x16xf32, #tpu.memory_space<vmem>>, vector<1x4x16xf32>
    %143 = vector.shape_cast %142 : vector<1x4x16xf32> to vector<4x16xf32>
    %144 = vector.shape_cast %140 : vector<4x16xf32> to vector<1x4x16xf32>
    tpu.vector_store %arg8[%141, %c0_52, %c0_53], %144 {strides = array<i32>} : memref<8x4x16xf32, #tpu.memory_space<vmem>>, vector<1x4x16xf32>,
    %c7_i32 = arith.constant 7 : i32
    %145 = math.tanh %133 : vector<4x32xf32>
    %cst_54 = arith.constant dense<0.000000e+00> : vector<4x32xf32>
    %146 = tpu.matmul %145, %3, %cst_54 {dimension_numbers = #tpu.dot_dimension_numbers<[1], [0], [0], [1], [0, 0, 1, 1], [], []>} : vector<4x32xf32>, vector<32x32xf32>, vector<4x32xf32> -> vector<4x32xf32>
    %147 = vector.broadcast %cst : f32 to vector<4x32xf32>
    %148 = arith.mulf %147, %133 : vector<4x32xf32>
    %149 = arith.addf %146, %7 : vector<4x32xf32>
    %150 = vector.broadcast %cst_10 : f32 to vector<4x32xf32>
    %151 = arith.mulf %150, %149 : vector<4x32xf32>
    %152 = arith.addf %148, %151 : vector<4x32xf32>
    %153 = math.tanh %152 : vector<4x32xf32>
    %cst_55 = arith.constant dense<0.000000e+00> : vector<4x16xf32>
    %154 = tpu.matmul %153, %4, %cst_55 {dimension_numbers = #tpu.dot_dimension_numbers<[1], [0], [0], [1], [0, 0, 1, 1], [], []>} : vector<4x32xf32>, vector<32x16xf32>, vector<4x16xf32> -> vector<4x16xf32>
    %155 = arith.addf %154, %10 : vector<4x16xf32>
    %156 = arith.index_cast %c7_i32 : i32 to index
    %c0_56 = arith.constant 0 : index
    %c0_57 = arith.constant 0 : index
    %157 = vector.load %arg2[%156, %c0_56, %c0_57] : memref<8x4x16xf32, #tpu.memory_space<vmem>>, vector<1x4x16xf32>
    %158 = vector.shape_cast %157 : vector<1x4x16xf32> to vector<4x16xf32>
    %159 = arith.subf %155, %158 : vector<4x16xf32>
    %160 = arith.index_cast %c7_i32 : i32 to index
    %c0_58 = arith.constant 0 : index
    %c0_59 = arith.constant 0 : index
    %161 = vector.load %arg8[%160, %c0_58, %c0_59] : memref<8x4x16xf32, #tpu.memory_space<vmem>>, vector<1x4x16xf32>
    %162 = vector.shape_cast %161 : vector<1x4x16xf32> to vector<4x16xf32>
    %163 = vector.shape_cast %159 : vector<4x16xf32> to vector<1x4x16xf32>
    tpu.vector_store %arg8[%160, %c0_58, %c0_59], %163 {strides = array<i32>} : memref<8x4x16xf32, #tpu.memory_space<vmem>>, vector<1x4x16xf32>,
    %c8_i32 = arith.constant 8 : i32
    %c0_60 = arith.constant 0 : index
    %c0_61 = arith.constant 0 : index
    %164 = vector.load %arg9[%c0_60, %c0_61] : memref<4x32xf32, #tpu.memory_space<vmem>>, vector<4x32xf32>
    tpu.vector_store %arg9[%c0_60, %c0_61], %152 {strides = array<i32>} : memref<4x32xf32, #tpu.memory_space<vmem>>, vector<4x32xf32>,
    return
  }
  func.func @transform_0(%arg0: i32, %arg1: i32) -> (i32, i32, i32) {
    %c0_i32 = arith.constant 0 : i32
    %c0_i32_0 = arith.constant 0 : i32
    return %arg1, %arg0, %c0_i32 : i32, i32, i32
  }
  func.func @transform_1(%arg0: i32, %arg1: i32) -> (i32, i32) {
    %c0_i32 = arith.constant 0 : i32
    %c0_i32_0 = arith.constant 0 : i32
    return %arg0, %c0_i32 : i32, i32
  }
  func.func @transform_2(%arg0: i32, %arg1: i32) -> (i32, i32) {
    %c0_i32 = arith.constant 0 : i32
    %c0_i32_0 = arith.constant 0 : i32
    %c0_i32_1 = arith.constant 0 : i32
    return %c0_i32, %c0_i32_0 : i32, i32
  }
  func.func @transform_3(%arg0: i32, %arg1: i32) -> (i32, i32) {
    %c0_i32 = arith.constant 0 : i32
    %c0_i32_0 = arith.constant 0 : i32
    %c0_i32_1 = arith.constant 0 : i32
    return %c0_i32, %c0_i32_0 : i32, i32
  }
  func.func @transform_4(%arg0: i32, %arg1: i32) -> (i32, i32) {
    %c0_i32 = arith.constant 0 : i32
    %c0_i32_0 = arith.constant 0 : i32
    %c0_i32_1 = arith.constant 0 : i32
    return %c0_i32, %c0_i32_0 : i32, i32
  }
  func.func @transform_5(%arg0: i32, %arg1: i32) -> (i32, i32) {
    %c0_i32 = arith.constant 0 : i32
    %c0_i32_0 = arith.constant 0 : i32
    %c0_i32_1 = arith.constant 0 : i32
    return %c0_i32, %c0_i32_0 : i32, i32
  }
  func.func @transform_6(%arg0: i32, %arg1: i32) -> (i32, i32, i32) {
    %c0_i32 = arith.constant 0 : i32
    %c0_i32_0 = arith.constant 0 : i32
    return %arg1, %arg0, %c0_i32 : i32, i32, i32
  }
}

</mosaic_0001>

<llo_original>
// kernel: tpu_custom_call.1
$region0: #{tpu_custom_call.1}
  #allocation0 [shape = 'u32[]', space=smem, size = 0x4, offset = 0x4, fixed_abs, tag = 'smem constant byte address 0x4 - core index']
  #allocation1 [shape = 'u32[144,128]{1,0:T(1,128)}', space=vmem, size = 0x12000, scoped, tag = 'internal scratch']
  #allocation2 [shape = 'f32[4,32]{1,0:T(4,128)}', space=vmem, size = 0x800, scoped, tag = 'scratch operand']
  %s0 = inlined_call_operand.vmem [shape: f32[8,4,16], index: 0, kind: input, shape index: {}]
  %s1 = inlined_call_operand.vmem [shape: f32[4,32], index: 1, kind: input, shape index: {}]
  %s2 = inlined_call_operand.hbm [shape: f32[32,32], index: 2, kind: input, shape index: {}]
  %s3 = inlined_call_operand.vmem [shape: f32[32,16], index: 3, kind: input, shape index: {}]
  %s4 = inlined_call_operand.vmem [shape: f32[1,32], index: 4, kind: input, shape index: {}]
  %s5 = inlined_call_operand.vmem [shape: f32[1,16], index: 5, kind: input, shape index: {}]
  %s6 = inlined_call_operand.hbm [shape: f32[8,4,16], index: 6, kind: output, shape index: {}]
  %s7 = sld [smem:[#allocation0]]
  $region42: #{tpu_custom_call.1} parent=0
    _
  %s9 = ssub.s32 1, %s7
  %s10 = scalar_select 0, %s9, %s7
  $region1: #{tpu_custom_call.1} parent=0
    #allocation3 [shape = 'u8[16384]{0}', space=vmem, size = 0x4000, scoped, tag = 'input window, operand 2, single buffered']
    #allocation4 [shape = 's32[1]{0}', space=sflag, size = 0x4, scoped, tag = 'scoped memory for tpu_custom_call.1']
    #allocation5 [shape = 's32[1]{0}', space=sflag, size = 0x4, scoped, tag = 'scoped memory for tpu_custom_call.1']
    #allocation6 [shape = 'u8[16384]{0}', space=vmem, size = 0x4000, scoped, tag = 'output window, operand 0, single buffered']
    %11 = vsyncpa [#allocation4], 0
    %12 = vsyncpa [#allocation5], 0
    // Predicated region
    $region2: #{tpu_custom_call.1} parent=1 // pred_check
      _
    $region3: #{tpu_custom_call.1} parent=1 // pred_check_branch
      %14 = sbr.rel (0) target = $region5
    $region4: #{tpu_custom_call.1} parent=1 // pred_region
      _
    $region5: #{tpu_custom_call.1} parent=1 // pred_fallthru
      _
    // Predicated region
    $region6: #{tpu_custom_call.1} parent=1 // pred_check
      _
    $region7: #{tpu_custom_call.1} parent=1 // pred_check_branch
      %16 = sbr.rel (0) target = $region9
    $region8: #{tpu_custom_call.1} parent=1 // pred_region
      _
    $region9: #{tpu_custom_call.1} parent=1 // pred_fallthru
      _
    // Predicated region
    $region10: #{tpu_custom_call.1} parent=1 // pred_check
      _
    $region11: #{tpu_custom_call.1} parent=1 // pred_check_branch
      %18 = sbr.rel (0) target = $region13
    $region12: #{tpu_custom_call.1} parent=1 // pred_region
      %s20 = ssub.s32 512, 512
      %21 = vsyncadd [#allocation4], %s20
      %s22 = sshll.u32 [#allocation3], 4
      %s23 = int_to_ptr.vmem [resolvable:$true] %s22
      %28 = dma.hbm_to_vmem [thread:$0]  %s2, 512, %s23, [#allocation4], 128, 128, 8
    $region13: #{tpu_custom_call.1} parent=1 // pred_fallthru
      _
    // Predicated region
    $region14: #{tpu_custom_call.1} parent=1 // pred_check
      _
    $region15: #{tpu_custom_call.1} parent=1 // pred_check_branch
      %30 = sbr.rel (0) target = $region17
    $region16: #{tpu_custom_call.1} parent=1 // pred_region
      _
    $region17: #{tpu_custom_call.1} parent=1 // pred_fallthru
      _
    // Predicated region
    $region18: #{tpu_custom_call.1} parent=1 // pred_check
      _
    $region19: #{tpu_custom_call.1} parent=1 // pred_check_branch
      %32 = sbr.rel (0) target = $region21
    $region20: #{tpu_custom_call.1} parent=1 // pred_region
      _
    $region21: #{tpu_custom_call.1} parent=1 // pred_fallthru
      _
    // Predicated region
    $region22: #{tpu_custom_call.1} parent=1 // pred_check
      _
    $region23: #{tpu_custom_call.1} parent=1 // pred_check_branch
      %34 = sbr.rel (0) target = $region25
    $region24: #{tpu_custom_call.1} parent=1 // pred_region
      _
    $region25: #{tpu_custom_call.1} parent=1 // pred_fallthru
      _
    // Predicated region
    $region26: #{tpu_custom_call.1} parent=1 // pred_check
      _
    $region27: #{tpu_custom_call.1} parent=1 // pred_check_branch
      %36 = sbr.rel (0) target = $region29
    $region28: #{tpu_custom_call.1} parent=1 // pred_region
      %37 = dma.done [#allocation4], 512
    $region29: #{tpu_custom_call.1} parent=1 // pred_fallthru
      _
    %p38 = scmp.eq.s32.totalorder 0, 0
    // Predicated region
    $region30: #{tpu_custom_call.1} parent=1 // pred_check
      %p39 = pneg %p38
    $region31: #{tpu_custom_call.1} parent=1 // pred_check_branch
      %41 = sbr.rel (%p39) target = $region33
    $region32: #{tpu_custom_call.1} parent=1 // pred_region
      %v42 = vld [vmem:[%s1] sm:$0xf]
      %vm43 = vcmask 257024
      %44 = vst.msk [vmem:[#allocation2] sm:$0xf] %vm43, %v42
    $region33: #{tpu_custom_call.1} parent=1 // pred_fallthru
      _
    %v45 = vld [vmem:[#allocation3] sm:$0xff]
    %v46 = vld [vmem:[#allocation3 + $0x8] sm:$0xff]
    %v47 = vld [vmem:[#allocation3 + $0x10] sm:$0xff]
    %v48 = vld [vmem:[#allocation3 + $0x18] sm:$0xff]
    %v49 = vld [vmem:[%s3] sm:$0xff]
    %v50 = vld [vmem:[%s3 + $0x8] sm:$0xff]
    %v51 = vld [vmem:[%s3 + $0x10] sm:$0xff]
    %v52 = vld [vmem:[%s3 + $0x18] sm:$0xff]
    %v53 = vld [vmem:[%s4] sm:$0x1]
    %v55 = vlaneseq
    %v56 = vshrl.u32 %v55, 7
    %v57 = vsub.s32 0, %v56
    %v58 = vrot.slane %v53, %v57
    %v60 = vld [vmem:[%s5] sm:$0x1]
    %v62 = vlaneseq
    %v63 = vshrl.u32 %v62, 7
    %v64 = vsub.s32 0, %v63
    %v65 = vrot.slane %v60, %v64
    %v67 = vld [vmem:[#allocation2] sm:$0xf]
    %v68 = vtanh.pop %v67
    %v69 = vmul.f32 %v67, 0.5
    %vm70 = vcmask 261120
    %v72 = vsel %vm70, %v68, 0
    %74 = vmatprep.subr.mxu0 0.0
    %75 = vmatpush1.msra.mxu0 %v45
    %76 = vmatprep.subr.mxu0 0.0
    %77 = vmatpush1.msra.mxu0 %v46
    %78 = vmatprep.subr.mxu0 0.0
    %79 = vmatpush1.msra.mxu0 %v47
    %80 = vmatprep.subr.mxu0 0.0
    %81 = vmatpush1.msra.mxu0 %v48
    %82 = vmatprep.subr.mxu0 0.0
    %83 = vmatpush1.msra.mxu0 0.0
    %84 = vmatprep.subr.mxu0 0.0
    %85 = vmatpush1.msra.mxu0 0.0
    %86 = vmatprep.subr.mxu0 0.0
    %87 = vmatpush1.msra.mxu0 0.0
    %88 = vmatprep.subr.mxu0 0.0
    %89 = vmatpush1.msra.mxu0 0.0
    %90 = vmatprep.subr.mxu0 0.0
    %91 = vmatpush1.msra.mxu0 0.0
    %92 = vmatprep.subr.mxu0 0.0
    %93 = vmatpush1.msra.mxu0 0.0
    %94 = vmatprep.subr.mxu0 0.0
    %95 = vmatpush1.msra.mxu0 0.0
    %96 = vmatprep.subr.mxu0 0.0
    %97 = vmatpush1.msra.mxu0 0.0
    %98 = vmatprep.subr.mxu0 0.0
    %99 = vmatpush1.msra.mxu0 0.0
    %100 = vmatprep.subr.mxu0 0.0
    %101 = vmatpush1.msra.mxu0 0.0
    %102 = vmatprep.subr.mxu0 0.0
    %103 = vmatpush1.msra.mxu0 0.0
    %104 = vmatprep.subr.mxu0 0.0
    %105 = vmatpush1.msra.mxu0 0.0
    %106 = vmatprep.subr.mxu0 0.0
    %107 = vmatpush1.msra.mxu0 0.0
    %108 = vmatprep.subr.mxu0 0.0
    %109 = vmatpush1.msra.mxu0 0.0
    %110 = vmatprep.subr.mxu0 0.0
    %111 = vmatpush1.msra.mxu0 0.0
    %112 = vmatprep.subr.mxu0 0.0
    %113 = vmatpush1.msra.mxu0 0.0
    %114 = vmatprep.subr.mxu0 0.0
    %115 = vmatpush1.msra.mxu0 0.0
    %116 = vmatprep.subr.mxu0 0.0
    %117 = vmatpush1.msra.mxu0 0.0
    %118 = vmatprep.subr.mxu0 0.0
    %119 = vmatpush1.msra.mxu0 0.0
    %120 = vmatprep.subr.mxu0 0.0
    %121 = vmatpush1.msra.mxu0 0.0
    %122 = vmatprep.subr.mxu0 0.0
    %123 = vmatpush1.msra.mxu0 0.0
    %124 = vmatprep.subr.mxu0 0.0
    %125 = vmatpush1.msra.mxu0 0.0
    %126 = vmatprep.subr.mxu0 0.0
    %127 = vmatpush1.msra.mxu0 0.0
    %128 = vmatprep.subr.mxu0 0.0
    %129 = vmatpush1.msra.mxu0 0.0
    %130 = vmatprep.subr.mxu0 0.0
    %131 = vmatpush1.msra.mxu0 0.0
    %132 = vmatprep.subr.mxu0 0.0
    %133 = vmatpush1.msra.mxu0 0.0
    %134 = vmatprep.subr.mxu0 0.0
    %135 = vmatpush1.msra.mxu0 0.0
    %136 = vmatprep.subr.mxu0 0.0
    %137 = vmatpush1.msra.mxu0 0.0
    %138 = vmatprep.mubr.f32.mxu0 0.0
    %139 = vmatmul.mubr.f32.gmra.mrb[0].mxu0 %v72
    %v140 = vpop.f32.mrb[0].mxu0
    %v141 = vadd.f32 %v58, %v140
    %v142 = vpop.f32.mrb[0].mxu0
    %143 = vdwg.mxu0
    %v144 = vmul.f32 %v141, 0.5
    %v145 = vadd.f32 %v69, %v144
    %v146 = vtanh.pop %v145
    %v148 = vsel %vm70, %v146, 0
    %150 = vmatprep.subr.mxu0 0.0
    %151 = vmatpush1.msra.mxu0 %v49
    %152 = vmatprep.subr.mxu0 0.0
    %153 = vmatpush1.msra.mxu0 %v50
    %154 = vmatprep.subr.mxu0 0.0
    %155 = vmatpush1.msra.mxu0 %v51
    %156 = vmatprep.subr.mxu0 0.0
    %157 = vmatpush1.msra.mxu0 %v52
    %158 = vmatprep.subr.mxu0 0.0
    %159 = vmatpush1.msra.mxu0 0.0
    %160 = vmatprep.subr.mxu0 0.0
    %161 = vmatpush1.msra.mxu0 0.0
    %162 = vmatprep.subr.mxu0 0.0
    %163 = vmatpush1.msra.mxu0 0.0
    %164 = vmatprep.subr.mxu0 0.0
    %165 = vmatpush1.msra.mxu0 0.0
    %166 = vmatprep.subr.mxu0 0.0
    %167 = vmatpush1.msra.mxu0 0.0
    %168 = vmatprep.subr.mxu0 0.0
    %169 = vmatpush1.msra.mxu0 0.0
    %170 = vmatprep.subr.mxu0 0.0
    %171 = vmatpush1.msra.mxu0 0.0
    %172 = vmatprep.subr.mxu0 0.0
    %173 = vmatpush1.msra.mxu0 0.0
    %174 = vmatprep.subr.mxu0 0.0
    %175 = vmatpush1.msra.mxu0 0.0
    %176 = vmatprep.subr.mxu0 0.0
    %177 = vmatpush1.msra.mxu0 0.0
    %178 = vmatprep.subr.mxu0 0.0
    %179 = vmatpush1.msra.mxu0 0.0
    %180 = vmatprep.subr.mxu0 0.0
    %181 = vmatpush1.msra.mxu0 0.0
    %182 = vmatprep.subr.mxu0 0.0
    %183 = vmatpush1.msra.mxu0 0.0
    %184 = vmatprep.subr.mxu0 0.0
    %185 = vmatpush1.msra.mxu0 0.0
    %186 = vmatprep.subr.mxu0 0.0
    %187 = vmatpush1.msra.mxu0 0.0
    %188 = vmatprep.subr.mxu0 0.0
    %189 = vmatpush1.msra.mxu0 0.0
    %190 = vmatprep.subr.mxu0 0.0
    %191 = vmatpush1.msra.mxu0 0.0
    %192 = vmatprep.subr.mxu0 0.0
    %193 = vmatpush1.msra.mxu0 0.0
    %194 = vmatprep.subr.mxu0 0.0
    %195 = vmatpush1.msra.mxu0 0.0
    %196 = vmatprep.subr.mxu0 0.0
    %197 = vmatpush1.msra.mxu0 0.0
    %198 = vmatprep.subr.mxu0 0.0
    %199 = vmatpush1.msra.mxu0 0.0
    %200 = vmatprep.subr.mxu0 0.0
    %201 = vmatpush1.msra.mxu0 0.0
    %202 = vmatprep.subr.mxu0 0.0
    %203 = vmatpush1.msra.mxu0 0.0
    %204 = vmatprep.subr.mxu0 0.0
    %205 = vmatpush1.msra.mxu0 0.0
    %206 = vmatprep.subr.mxu0 0.0
    %207 = vmatpush1.msra.mxu0 0.0
    %208 = vmatprep.subr.mxu0 0.0
    %209 = vmatpush1.msra.mxu0 0.0
    %210 = vmatprep.subr.mxu0 0.0
    %211 = vmatpush1.msra.mxu0 0.0
    %212 = vmatprep.subr.mxu0 0.0
    %213 = vmatpush1.msra.mxu0 0.0
    %214 = vmatprep.mubr.f32.mxu0 0.0
    %215 = vmatmul.mubr.f32.gmra.mrb[0].mxu0 %v148
    %v216 = vpop.f32.mrb[0].mxu0
    %v217 = vadd.f32 %v65, %v216
    %v218 = vpop.f32.mrb[0].mxu0
    %219 = vdwg.mxu0
    %v220 = vld [vmem:[%s0] sm:$0xf]
    %v221 = vsub.f32 %v217, %v220
    %vm222 = vcmask 125952
    %223 = vst.msk [vmem:[#allocation6] sm:$0xf] %vm222, %v221
    %v224 = vmul.f32 %v145, 0.5
    %225 = vmatprep.subr.mxu0 0.0
    %226 = vmatpush1.msra.mxu0 %v45
    %227 = vmatprep.subr.mxu0 0.0
    %228 = vmatpush1.msra.mxu0 %v46
    %229 = vmatprep.subr.mxu0 0.0
    %230 = vmatpush1.msra.mxu0 %v47
    %231 = vmatprep.subr.mxu0 0.0
    %232 = vmatpush1.msra.mxu0 %v48
    %233 = vmatprep.subr.mxu0 0.0
    %234 = vmatpush1.msra.mxu0 0.0
    %235 = vmatprep.subr.mxu0 0.0
    %236 = vmatpush1.msra.mxu0 0.0
    %237 = vmatprep.subr.mxu0 0.0
    %238 = vmatpush1.msra.mxu0 0.0
    %239 = vmatprep.subr.mxu0 0.0
    %240 = vmatpush1.msra.mxu0 0.0
    %241 = vmatprep.subr.mxu0 0.0
    %242 = vmatpush1.msra.mxu0 0.0
    %243 = vmatprep.subr.mxu0 0.0
    %244 = vmatpush1.msra.mxu0 0.0
    %245 = vmatprep.subr.mxu0 0.0
    %246 = vmatpush1.msra.mxu0 0.0
    %247 = vmatprep.subr.mxu0 0.0
    %248 = vmatpush1.msra.mxu0 0.0
    %249 = vmatprep.subr.mxu0 0.0
    %250 = vmatpush1.msra.mxu0 0.0
    %251 = vmatprep.subr.mxu0 0.0
    %252 = vmatpush1.msra.mxu0 0.0
    %253 = vmatprep.subr.mxu0 0.0
    %254 = vmatpush1.msra.mxu0 0.0
    %255 = vmatprep.subr.mxu0 0.0
    %256 = vmatpush1.msra.mxu0 0.0
    %257 = vmatprep.subr.mxu0 0.0
    %258 = vmatpush1.msra.mxu0 0.0
    %259 = vmatprep.subr.mxu0 0.0
    %260 = vmatpush1.msra.mxu0 0.0
    %261 = vmatprep.subr.mxu0 0.0
    %262 = vmatpush1.msra.mxu0 0.0
    %263 = vmatprep.subr.mxu0 0.0
    %264 = vmatpush1.msra.mxu0 0.0
    %265 = vmatprep.subr.mxu0 0.0
    %266 = vmatpush1.msra.mxu0 0.0
    %267 = vmatprep.subr.mxu0 0.0
    %268 = vmatpush1.msra.mxu0 0.0
    %269 = vmatprep.subr.mxu0 0.0
    %270 = vmatpush1.msra.mxu0 0.0
    %271 = vmatprep.subr.mxu0 0.0
    %272 = vmatpush1.msra.mxu0 0.0
    %273 = vmatprep.subr.mxu0 0.0
    %274 = vmatpush1.msra.mxu0 0.0
    %275 = vmatprep.subr.mxu0 0.0
    %276 = vmatpush1.msra.mxu0 0.0
    %277 = vmatprep.subr.mxu0 0.0
    %278 = vmatpush1.msra.mxu0 0.0
    %279 = vmatprep.subr.mxu0 0.0
    %280 = vmatpush1.msra.mxu0 0.0
    %281 = vmatprep.subr.mxu0 0.0
    %282 = vmatpush1.msra.mxu0 0.0
    %283 = vmatprep.subr.mxu0 0.0
    %284 = vmatpush1.msra.mxu0 0.0
    %285 = vmatprep.subr.mxu0 0.0
    %286 = vmatpush1.msra.mxu0 0.0
    %287 = vmatprep.subr.mxu0 0.0
    %288 = vmatpush1.msra.mxu0 0.0
    %289 = vmatprep.mubr.f32.mxu0 0.0
    %290 = vmatmul.mubr.f32.gmra.mrb[0].mxu0 %v148
    %v291 = vpop.f32.mrb[0].mxu0
    %v292 = vadd.f32 %v58, %v291
    %v293 = vpop.f32.mrb[0].mxu0
    %294 = vdwg.mxu0
    %v295 = vmul.f32 %v292, 0.5
    %v296 = vadd.f32 %v224, %v295
    %v297 = vtanh.pop %v296
    %v299 = vsel %vm70, %v297, 0
    %301 = vmatprep.subr.mxu0 0.0
    %302 = vmatpush1.msra.mxu0 %v49
    %303 = vmatprep.subr.mxu0 0.0
    %304 = vmatpush1.msra.mxu0 %v50
    %305 = vmatprep.subr.mxu0 0.0
    %306 = vmatpush1.msra.mxu0 %v51
    %307 = vmatprep.subr.mxu0 0.0
    %308 = vmatpush1.msra.mxu0 %v52
    %309 = vmatprep.subr.mxu0 0.0
    %310 = vmatpush1.msra.mxu0 0.0
    %311 = vmatprep.subr.mxu0 0.0
    %312 = vmatpush1.msra.mxu0 0.0
    %313 = vmatprep.subr.mxu0 0.0
    %314 = vmatpush1.msra.mxu0 0.0
    %315 = vmatprep.subr.mxu0 0.0
    %316 = vmatpush1.msra.mxu0 0.0
    %317 = vmatprep.subr.mxu0 0.0
    %318 = vmatpush1.msra.mxu0 0.0
    %319 = vmatprep.subr.mxu0 0.0
    %320 = vmatpush1.msra.mxu0 0.0
    %321 = vmatprep.subr.mxu0 0.0
    %322 = vmatpush1.msra.mxu0 0.0
    %323 = vmatprep.subr.mxu0 0.0
    %324 = vmatpush1.msra.mxu0 0.0
    %325 = vmatprep.subr.mxu0 0.0
    %326 = vmatpush1.msra.mxu0 0.0
    %327 = vmatprep.subr.mxu0 0.0
    %328 = vmatpush1.msra.mxu0 0.0
    %329 = vmatprep.subr.mxu0 0.0
    %330 = vmatpush1.msra.mxu0 0.0
    %331 = vmatprep.subr.mxu0 0.0
    %332 = vmatpush1.msra.mxu0 0.0
    %333 = vmatprep.subr.mxu0 0.0
    %334 = vmatpush1.msra.mxu0 0.0
    %335 = vmatprep.subr.mxu0 0.0
    %336 = vmatpush1.msra.mxu0 0.0
    %337 = vmatprep.subr.mxu0 0.0
    %338 = vmatpush1.msra.mxu0 0.0
    %339 = vmatprep.subr.mxu0 0.0
    %340 = vmatpush1.msra.mxu0 0.0
    %341 = vmatprep.subr.mxu0 0.0
    %342 = vmatpush1.msra.mxu0 0.0
    %343 = vmatprep.subr.mxu0 0.0
    %344 = vmatpush1.msra.mxu0 0.0
    %345 = vmatprep.subr.mxu0 0.0
    %346 = vmatpush1.msra.mxu0 0.0
    %347 = vmatprep.subr.mxu0 0.0
    %348 = vmatpush1.msra.mxu0 0.0
    %349 = vmatprep.subr.mxu0 0.0
    %350 = vmatpush1.msra.mxu0 0.0
    %351 = vmatprep.subr.mxu0 0.0
    %352 = vmatpush1.msra.mxu0 0.0
    %353 = vmatprep.subr.mxu0 0.0
    %354 = vmatpush1.msra.mxu0 0.0
    %355 = vmatprep.subr.mxu0 0.0
    %356 = vmatpush1.msra.mxu0 0.0
    %357 = vmatprep.subr.mxu0 0.0
    %358 = vmatpush1.msra.mxu0 0.0
    %359 = vmatprep.subr.mxu0 0.0
    %360 = vmatpush1.msra.mxu0 0.0
    %361 = vmatprep.subr.mxu0 0.0
    %362 = vmatpush1.msra.mxu0 0.0
    %363 = vmatprep.subr.mxu0 0.0
    %364 = vmatpush1.msra.mxu0 0.0
    %365 = vmatprep.mubr.f32.mxu0 0.0
    %366 = vmatmul.mubr.f32.gmra.mrb[0].mxu0 %v299
    %v367 = vpop.f32.mrb[0].mxu0
    %v368 = vadd.f32 %v65, %v367
    %v369 = vpop.f32.mrb[0].mxu0
    %370 = vdwg.mxu0
    %s371 = scalar_lea.vmem %s0, 4
    %v372 = vld [vmem:[%s371] sm:$0xf]
    %v373 = vsub.f32 %v368, %v372
    %s374 = scalar_lea.vmem [#allocation6], 4
    %375 = vst.msk [vmem:[%s374] sm:$0xf] %vm222, %v373
    %v376 = vmul.f32 %v296, 0.5
    %377 = vmatprep.subr.mxu0 0.0
    %378 = vmatpush1.msra.mxu0 %v45
    %379 = vmatprep.subr.mxu0 0.0
    %380 = vmatpush1.msra.mxu0 %v46
    %381 = vmatprep.subr.mxu0 0.0
    %382 = vmatpush1.msra.mxu0 %v47
    %383 = vmatprep.subr.mxu0 0.0
    %384 = vmatpush1.msra.mxu0 %v48
    %385 = vmatprep.subr.mxu0 0.0
    %386 = vmatpush1.msra.mxu0 0.0
    %387 = vmatprep.subr.mxu0 0.0
    %388 = vmatpush1.msra.mxu0 0.0
    %389 = vmatprep.subr.mxu0 0.0
    %390 = vmatpush1.msra.mxu0 0.0
    %391 = vmatprep.subr.mxu0 0.0
    %392 = vmatpush1.msra.mxu0 0.0
    %393 = vmatprep.subr.mxu0 0.0
    %394 = vmatpush1.msra.mxu0 0.0
    %395 = vmatprep.subr.mxu0 0.0
    %396 = vmatpush1.msra.mxu0 0.0
    %397 = vmatprep.subr.mxu0 0.0
    %398 = vmatpush1.msra.mxu0 0.0
    %399 = vmatprep.subr.mxu0 0.0
    %400 = vmatpush1.msra.mxu0 0.0
    %401 = vmatprep.subr.mxu0 0.0
    %402 = vmatpush1.msra.mxu0 0.0
    %403 = vmatprep.subr.mxu0 0.0
    %404 = vmatpush1.msra.mxu0 0.0
    %405 = vmatprep.subr.mxu0 0.0
    %406 = vmatpush1.msra.mxu0 0.0
    %407 = vmatprep.subr.mxu0 0.0
    %408 = vmatpush1.msra.mxu0 0.0
    %409 = vmatprep.subr.mxu0 0.0
    %410 = vmatpush1.msra.mxu0 0.0
    %411 = vmatprep.subr.mxu0 0.0
    %412 = vmatpush1.msra.mxu0 0.0
    %413 = vmatprep.subr.mxu0 0.0
    %414 = vmatpush1.msra.mxu0 0.0
    %415 = vmatprep.subr.mxu0 0.0
    %416 = vmatpush1.msra.mxu0 0.0
    %417 = vmatprep.subr.mxu0 0.0
    %418 = vmatpush1.msra.mxu0 0.0
    %419 = vmatprep.subr.mxu0 0.0
    %420 = vmatpush1.msra.mxu0 0.0
    %421 = vmatprep.subr.mxu0 0.0
    %422 = vmatpush1.msra.mxu0 0.0
    %423 = vmatprep.subr.mxu0 0.0
    %424 = vmatpush1.msra.mxu0 0.0
    %425 = vmatprep.subr.mxu0 0.0
    %426 = vmatpush1.msra.mxu0 0.0
    %427 = vmatprep.subr.mxu0 0.0
    %428 = vmatpush1.msra.mxu0 0.0
    %429 = vmatprep.subr.mxu0 0.0
    %430 = vmatpush1.msra.mxu0 0.0
    %431 = vmatprep.subr.mxu0 0.0
    %432 = vmatpush1.msra.mxu0 0.0
    %433 = vmatprep.subr.mxu0 0.0
    %434 = vmatpush1.msra.mxu0 0.0
    %435 = vmatprep.subr.mxu0 0.0
    %436 = vmatpush1.msra.mxu0 0.0
    %437 = vmatprep.subr.mxu0 0.0
    %438 = vmatpush1.msra.mxu0 0.0
    %439 = vmatprep.subr.mxu0 0.0
    %440 = vmatpush1.msra.mxu0 0.0
    %441 = vmatprep.mubr.f32.mxu0 0.0
    %442 = vmatmul.mubr.f32.gmra.mrb[0].mxu0 %v299
    %v443 = vpop.f32.mrb[0].mxu0
    %v444 = vadd.f32 %v58, %v443
    %v445 = vpop.f32.mrb[0].mxu0
    %446 = vdwg.mxu0
    %v447 = vmul.f32 %v444, 0.5
    %v448 = vadd.f32 %v376, %v447
    %v449 = vtanh.pop %v448
    %v451 = vsel %vm70, %v449, 0
    %453 = vmatprep.subr.mxu0 0.0
    %454 = vmatpush1.msra.mxu0 %v49
    %455 = vmatprep.subr.mxu0 0.0
    %456 = vmatpush1.msra.mxu0 %v50
    %457 = vmatprep.subr.mxu0 0.0
    %458 = vmatpush1.msra.mxu0 %v51
    %459 = vmatprep.subr.mxu0 0.0
    %460 = vmatpush1.msra.mxu0 %v52
    %461 = vmatprep.subr.mxu0 0.0
    %462 = vmatpush1.msra.mxu0 0.0
    %463 = vmatprep.subr.mxu0 0.0
    %464 = vmatpush1.msra.mxu0 0.0
    %465 = vmatprep.subr.mxu0 0.0
    %466 = vmatpush1.msra.mxu0 0.0
    %467 = vmatprep.subr.mxu0 0.0
    %468 = vmatpush1.msra.mxu0 0.0
    %469 = vmatprep.subr.mxu0 0.0
    %470 = vmatpush1.msra.mxu0 0.0
    %471 = vmatprep.subr.mxu0 0.0
    %472 = vmatpush1.msra.mxu0 0.0
    %473 = vmatprep.subr.mxu0 0.0
    %474 = vmatpush1.msra.mxu0 0.0
    %475 = vmatprep.subr.mxu0 0.0
    %476 = vmatpush1.msra.mxu0 0.0
    %477 = vmatprep.subr.mxu0 0.0
    %478 = vmatpush1.msra.mxu0 0.0
    %479 = vmatprep.subr.mxu0 0.0
    %480 = vmatpush1.msra.mxu0 0.0
    %481 = vmatprep.subr.mxu0 0.0
    %482 = vmatpush1.msra.mxu0 0.0
    %483 = vmatprep.subr.mxu0 0.0
    %484 = vmatpush1.msra.mxu0 0.0
    %485 = vmatprep.subr.mxu0 0.0
    %486 = vmatpush1.msra.mxu0 0.0
    %487 = vmatprep.subr.mxu0 0.0
    %488 = vmatpush1.msra.mxu0 0.0
    %489 = vmatprep.subr.mxu0 0.0
    %490 = vmatpush1.msra.mxu0 0.0
    %491 = vmatprep.subr.mxu0 0.0
    %492 = vmatpush1.msra.mxu0 0.0
    %493 = vmatprep.subr.mxu0 0.0
    %494 = vmatpush1.msra.mxu0 0.0
    %495 = vmatprep.subr.mxu0 0.0
    %496 = vmatpush1.msra.mxu0 0.0
    %497 = vmatprep.subr.mxu0 0.0
    %498 = vmatpush1.msra.mxu0 0.0
    %499 = vmatprep.subr.mxu0 0.0
    %500 = vmatpush1.msra.mxu0 0.0
    %501 = vmatprep.subr.mxu0 0.0
    %502 = vmatpush1.msra.mxu0 0.0
    %503 = vmatprep.subr.mxu0 0.0
    %504 = vmatpush1.msra.mxu0 0.0
    %505 = vmatprep.subr.mxu0 0.0
    %506 = vmatpush1.msra.mxu0 0.0
    %507 = vmatprep.subr.mxu0 0.0
    %508 = vmatpush1.msra.mxu0 0.0
    %509 = vmatprep.subr.mxu0 0.0
    %510 = vmatpush1.msra.mxu0 0.0
    %511 = vmatprep.subr.mxu0 0.0
    %512 = vmatpush1.msra.mxu0 0.0
    %513 = vmatprep.subr.mxu0 0.0
    %514 = vmatpush1.msra.mxu0 0.0
    %515 = vmatprep.subr.mxu0 0.0
    %516 = vmatpush1.msra.mxu0 0.0
    %517 = vmatprep.mubr.f32.mxu0 0.0
    %518 = vmatmul.mubr.f32.gmra.mrb[0].mxu0 %v451
    %v519 = vpop.f32.mrb[0].mxu0
    %v520 = vadd.f32 %v65, %v519
    %v521 = vpop.f32.mrb[0].mxu0
    %522 = vdwg.mxu0
    %s523 = scalar_lea.vmem %s0, 8
    %v524 = vld [vmem:[%s523] sm:$0xf]
    %v525 = vsub.f32 %v520, %v524
    %s526 = scalar_lea.vmem [#allocation6], 8
    %527 = vst.msk [vmem:[%s526] sm:$0xf] %vm222, %v525
    %v528 = vmul.f32 %v448, 0.5
    %529 = vmatprep.subr.mxu0 0.0
    %530 = vmatpush1.msra.mxu0 %v45
    %531 = vmatprep.subr.mxu0 0.0
    %532 = vmatpush1.msra.mxu0 %v46
    %533 = vmatprep.subr.mxu0 0.0
    %534 = vmatpush1.msra.mxu0 %v47
    %535 = vmatprep.subr.mxu0 0.0
    %536 = vmatpush1.msra.mxu0 %v48
    %537 = vmatprep.subr.mxu0 0.0
    %538 = vmatpush1.msra.mxu0 0.0
    %539 = vmatprep.subr.mxu0 0.0
    %540 = vmatpush1.msra.mxu0 0.0
    %541 = vmatprep.subr.mxu0 0.0
    %542 = vmatpush1.msra.mxu0 0.0
    %543 = vmatprep.subr.mxu0 0.0
    %544 = vmatpush1.msra.mxu0 0.0
    %545 = vmatprep.subr.mxu0 0.0
    %546 = vmatpush1.msra.mxu0 0.0
    %547 = vmatprep.subr.mxu0 0.0
    %548 = vmatpush1.msra.mxu0 0.0
    %549 = vmatprep.subr.mxu0 0.0
    %550 = vmatpush1.msra.mxu0 0.0
    %551 = vmatprep.subr.mxu0 0.0
    %552 = vmatpush1.msra.mxu0 0.0
    %553 = vmatprep.subr.mxu0 0.0
    %554 = vmatpush1.msra.mxu0 0.0
    %555 = vmatprep.subr.mxu0 0.0
    %556 = vmatpush1.msra.mxu0 0.0
    %557 = vmatprep.subr.mxu0 0.0
    %558 = vmatpush1.msra.mxu0 0.0
    %559 = vmatprep.subr.mxu0 0.0
    %560 = vmatpush1.msra.mxu0 0.0
    %561 = vmatprep.subr.mxu0 0.0
    %562 = vmatpush1.msra.mxu0 0.0
    %563 = vmatprep.subr.mxu0 0.0
    %564 = vmatpush1.msra.mxu0 0.0
    %565 = vmatprep.subr.mxu0 0.0
    %566 = vmatpush1.msra.mxu0 0.0
    %567 = vmatprep.subr.mxu0 0.0
    %568 = vmatpush1.msra.mxu0 0.0
    %569 = vmatprep.subr.mxu0 0.0
    %570 = vmatpush1.msra.mxu0 0.0
    %571 = vmatprep.subr.mxu0 0.0
    %572 = vmatpush1.msra.mxu0 0.0
    %573 = vmatprep.subr.mxu0 0.0
    %574 = vmatpush1.msra.mxu0 0.0
    %575 = vmatprep.subr.mxu0 0.0
    %576 = vmatpush1.msra.mxu0 0.0
    %577 = vmatprep.subr.mxu0 0.0
    %578 = vmatpush1.msra.mxu0 0.0
    %579 = vmatprep.subr.mxu0 0.0
    %580 = vmatpush1.msra.mxu0 0.0
    %581 = vmatprep.subr.mxu0 0.0
    %582 = vmatpush1.msra.mxu0 0.0
    %583 = vmatprep.subr.mxu0 0.0
    %584 = vmatpush1.msra.mxu0 0.0
    %585 = vmatprep.subr.mxu0 0.0
    %586 = vmatpush1.msra.mxu0 0.0
    %587 = vmatprep.subr.mxu0 0.0
    %588 = vmatpush1.msra.mxu0 0.0
    %589 = vmatprep.subr.mxu0 0.0
    %590 = vmatpush1.msra.mxu0 0.0
    %591 = vmatprep.subr.mxu0 0.0
    %592 = vmatpush1.msra.mxu0 0.0
    %593 = vmatprep.mubr.f32.mxu0 0.0
    %594 = vmatmul.mubr.f32.gmra.mrb[0].mxu0 %v451
    %v595 = vpop.f32.mrb[0].mxu0
    %v596 = vadd.f32 %v58, %v595
    %v597 = vpop.f32.mrb[0].mxu0
    %598 = vdwg.mxu0
    %v599 = vmul.f32 %v596, 0.5
    %v600 = vadd.f32 %v528, %v599
    %v601 = vtanh.pop %v600
    %v603 = vsel %vm70, %v601, 0
    %605 = vmatprep.subr.mxu0 0.0
    %606 = vmatpush1.msra.mxu0 %v49
    %607 = vmatprep.subr.mxu0 0.0
    %608 = vmatpush1.msra.mxu0 %v50
    %609 = vmatprep.subr.mxu0 0.0
    %610 = vmatpush1.msra.mxu0 %v51
    %611 = vmatprep.subr.mxu0 0.0
    %612 = vmatpush1.msra.mxu0 %v52
    %613 = vmatprep.subr.mxu0 0.0
    %614 = vmatpush1.msra.mxu0 0.0
    %615 = vmatprep.subr.mxu0 0.0
    %616 = vmatpush1.msra.mxu0 0.0
    %617 = vmatprep.subr.mxu0 0.0
    %618 = vmatpush1.msra.mxu0 0.0
    %619 = vmatprep.subr.mxu0 0.0
    %620 = vmatpush1.msra.mxu0 0.0
    %621 = vmatprep.subr.mxu0 0.0
    %622 = vmatpush1.msra.mxu0 0.0
    %623 = vmatprep.subr.mxu0 0.0
    %624 = vmatpush1.msra.mxu0 0.0
    %625 = vmatprep.subr.mxu0 0.0
    %626 = vmatpush1.msra.mxu0 0.0
    %627 = vmatprep.subr.mxu0 0.0
    %628 = vmatpush1.msra.mxu0 0.0
    %629 = vmatprep.subr.mxu0 0.0
    %630 = vmatpush1.msra.mxu0 0.0
    %631 = vmatprep.subr.mxu0 0.0
    %632 = vmatpush1.msra.mxu0 0.0
    %633 = vmatprep.subr.mxu0 0.0
    %634 = vmatpush1.msra.mxu0 0.0
    %635 = vmatprep.subr.mxu0 0.0
    %636 = vmatpush1.msra.mxu0 0.0
    %637 = vmatprep.subr.mxu0 0.0
    %638 = vmatpush1.msra.mxu0 0.0
    %639 = vmatprep.subr.mxu0 0.0
    %640 = vmatpush1.msra.mxu0 0.0
    %641 = vmatprep.subr.mxu0 0.0
    %642 = vmatpush1.msra.mxu0 0.0
    %643 = vmatprep.subr.mxu0 0.0
    %644 = vmatpush1.msra.mxu0 0.0
    %645 = vmatprep.subr.mxu0 0.0
    %646 = vmatpush1.msra.mxu0 0.0
    %647 = vmatprep.subr.mxu0 0.0
    %648 = vmatpush1.msra.mxu0 0.0
    %649 = vmatprep.subr.mxu0 0.0
    %650 = vmatpush1.msra.mxu0 0.0
    %651 = vmatprep.subr.mxu0 0.0
    %652 = vmatpush1.msra.mxu0 0.0
    %653 = vmatprep.subr.mxu0 0.0
    %654 = vmatpush1.msra.mxu0 0.0
    %655 = vmatprep.subr.mxu0 0.0
    %656 = vmatpush1.msra.mxu0 0.0
    %657 = vmatprep.subr.mxu0 0.0
    %658 = vmatpush1.msra.mxu0 0.0
    %659 = vmatprep.subr.mxu0 0.0
    %660 = vmatpush1.msra.mxu0 0.0
    %661 = vmatprep.subr.mxu0 0.0
    %662 = vmatpush1.msra.mxu0 0.0
    %663 = vmatprep.subr.mxu0 0.0
    %664 = vmatpush1.msra.mxu0 0.0
    %665 = vmatprep.subr.mxu0 0.0
    %666 = vmatpush1.msra.mxu0 0.0
    %667 = vmatprep.subr.mxu0 0.0
    %668 = vmatpush1.msra.mxu0 0.0
    %669 = vmatprep.mubr.f32.mxu0 0.0
    %670 = vmatmul.mubr.f32.gmra.mrb[0].mxu0 %v603
    %v671 = vpop.f32.mrb[0].mxu0
    %v672 = vadd.f32 %v65, %v671
    %v673 = vpop.f32.mrb[0].mxu0
    %674 = vdwg.mxu0
    %s675 = scalar_lea.vmem %s0, 12
    %v676 = vld [vmem:[%s675] sm:$0xf]
    %v677 = vsub.f32 %v672, %v676
    %s678 = scalar_lea.vmem [#allocation6], 12
    %679 = vst.msk [vmem:[%s678] sm:$0xf] %vm222, %v677
    %v680 = vmul.f32 %v600, 0.5
    %681 = vmatprep.subr.mxu0 0.0
    %682 = vmatpush1.msra.mxu0 %v45
    %683 = vmatprep.subr.mxu0 0.0
    %684 = vmatpush1.msra.mxu0 %v46
    %685 = vmatprep.subr.mxu0 0.0
    %686 = vmatpush1.msra.mxu0 %v47
    %687 = vmatprep.subr.mxu0 0.0
    %688 = vmatpush1.msra.mxu0 %v48
    %689 = vmatprep.subr.mxu0 0.0
    %690 = vmatpush1.msra.mxu0 0.0
    %691 = vmatprep.subr.mxu0 0.0
    %692 = vmatpush1.msra.mxu0 0.0
    %693 = vmatprep.subr.mxu0 0.0
    %694 = vmatpush1.msra.mxu0 0.0
    %695 = vmatprep.subr.mxu0 0.0
    %696 = vmatpush1.msra.mxu0 0.0
    %697 = vmatprep.subr.mxu0 0.0
    %698 = vmatpush1.msra.mxu0 0.0
    %699 = vmatprep.subr.mxu0 0.0
    %700 = vmatpush1.msra.mxu0 0.0
    %701 = vmatprep.subr.mxu0 0.0
    %702 = vmatpush1.msra.mxu0 0.0
    %703 = vmatprep.subr.mxu0 0.0
    %704 = vmatpush1.msra.mxu0 0.0
    %705 = vmatprep.subr.mxu0 0.0
    %706 = vmatpush1.msra.mxu0 0.0
    %707 = vmatprep.subr.mxu0 0.0
    %708 = vmatpush1.msra.mxu0 0.0
    %709 = vmatprep.subr.mxu0 0.0
    %710 = vmatpush1.msra.mxu0 0.0
    %711 = vmatprep.subr.mxu0 0.0
    %712 = vmatpush1.msra.mxu0 0.0
    %713 = vmatprep.subr.mxu0 0.0
    %714 = vmatpush1.msra.mxu0 0.0
    %715 = vmatprep.subr.mxu0 0.0
    %716 = vmatpush1.msra.mxu0 0.0
    %717 = vmatprep.subr.mxu0 0.0
    %718 = vmatpush1.msra.mxu0 0.0
    %719 = vmatprep.subr.mxu0 0.0
    %720 = vmatpush1.msra.mxu0 0.0
    %721 = vmatprep.subr.mxu0 0.0
    %722 = vmatpush1.msra.mxu0 0.0
    %723 = vmatprep.subr.mxu0 0.0
    %724 = vmatpush1.msra.mxu0 0.0
    %725 = vmatprep.subr.mxu0 0.0
    %726 = vmatpush1.msra.mxu0 0.0
    %727 = vmatprep.subr.mxu0 0.0
    %728 = vmatpush1.msra.mxu0 0.0
    %729 = vmatprep.subr.mxu0 0.0
    %730 = vmatpush1.msra.mxu0 0.0
    %731 = vmatprep.subr.mxu0 0.0
    %732 = vmatpush1.msra.mxu0 0.0
    %733 = vmatprep.subr.mxu0 0.0
    %734 = vmatpush1.msra.mxu0 0.0
    %735 = vmatprep.subr.mxu0 0.0
    %736 = vmatpush1.msra.mxu0 0.0
    %737 = vmatprep.subr.mxu0 0.0
    %738 = vmatpush1.msra.mxu0 0.0
    %739 = vmatprep.subr.mxu0 0.0
    %740 = vmatpush1.msra.mxu0 0.0
    %741 = vmatprep.subr.mxu0 0.0
    %742 = vmatpush1.msra.mxu0 0.0
    %743 = vmatprep.subr.mxu0 0.0
    %744 = vmatpush1.msra.mxu0 0.0
    %745 = vmatprep.mubr.f32.mxu0 0.0
    %746 = vmatmul.mubr.f32.gmra.mrb[0].mxu0 %v603
    %v747 = vpop.f32.mrb[0].mxu0
    %v748 = vadd.f32 %v58, %v747
    %v749 = vpop.f32.mrb[0].mxu0
    %750 = vdwg.mxu0
    %v751 = vmul.f32 %v748, 0.5
    %v752 = vadd.f32 %v680, %v751
    %v753 = vtanh.pop %v752
    %v755 = vsel %vm70, %v753, 0
    %757 = vmatprep.subr.mxu0 0.0
    %758 = vmatpush1.msra.mxu0 %v49
    %759 = vmatprep.subr.mxu0 0.0
    %760 = vmatpush1.msra.mxu0 %v50
    %761 = vmatprep.subr.mxu0 0.0
    %762 = vmatpush1.msra.mxu0 %v51
    %763 = vmatprep.subr.mxu0 0.0
    %764 = vmatpush1.msra.mxu0 %v52
    %765 = vmatprep.subr.mxu0 0.0
    %766 = vmatpush1.msra.mxu0 0.0
    %767 = vmatprep.subr.mxu0 0.0
    %768 = vmatpush1.msra.mxu0 0.0
    %769 = vmatprep.subr.mxu0 0.0
    %770 = vmatpush1.msra.mxu0 0.0
    %771 = vmatprep.subr.mxu0 0.0
    %772 = vmatpush1.msra.mxu0 0.0
    %773 = vmatprep.subr.mxu0 0.0
    %774 = vmatpush1.msra.mxu0 0.0
    %775 = vmatprep.subr.mxu0 0.0
    %776 = vmatpush1.msra.mxu0 0.0
    %777 = vmatprep.subr.mxu0 0.0
    %778 = vmatpush1.msra.mxu0 0.0
    %779 = vmatprep.subr.mxu0 0.0
    %780 = vmatpush1.msra.mxu0 0.0
    %781 = vmatprep.subr.mxu0 0.0
    %782 = vmatpush1.msra.mxu0 0.0
    %783 = vmatprep.subr.mxu0 0.0
    %784 = vmatpush1.msra.mxu0 0.0
    %785 = vmatprep.subr.mxu0 0.0
    %786 = vmatpush1.msra.mxu0 0.0
    %787 = vmatprep.subr.mxu0 0.0
    %788 = vmatpush1.msra.mxu0 0.0
    %789 = vmatprep.subr.mxu0 0.0
    %790 = vmatpush1.msra.mxu0 0.0
    %791 = vmatprep.subr.mxu0 0.0
    %792 = vmatpush1.msra.mxu0 0.0
    %793 = vmatprep.subr.mxu0 0.0
    %794 = vmatpush1.msra.mxu0 0.0
    %795 = vmatprep.subr.mxu0 0.0
    %796 = vmatpush1.msra.mxu0 0.0
    %797 = vmatprep.subr.mxu0 0.0
    %798 = vmatpush1.msra.mxu0 0.0
    %799 = vmatprep.subr.mxu0 0.0
    %800 = vmatpush1.msra.mxu0 0.0
    %801 = vmatprep.subr.mxu0 0.0
    %802 = vmatpush1.msra.mxu0 0.0
    %803 = vmatprep.subr.mxu0 0.0
    %804 = vmatpush1.msra.mxu0 0.0
    %805 = vmatprep.subr.mxu0 0.0
    %806 = vmatpush1.msra.mxu0 0.0
    %807 = vmatprep.subr.mxu0 0.0
    %808 = vmatpush1.msra.mxu0 0.0
    %809 = vmatprep.subr.mxu0 0.0
    %810 = vmatpush1.msra.mxu0 0.0
    %811 = vmatprep.subr.mxu0 0.0
    %812 = vmatpush1.msra.mxu0 0.0
    %813 = vmatprep.subr.mxu0 0.0
    %814 = vmatpush1.msra.mxu0 0.0
    %815 = vmatprep.subr.mxu0 0.0
    %816 = vmatpush1.msra.mxu0 0.0
    %817 = vmatprep.subr.mxu0 0.0
    %818 = vmatpush1.msra.mxu0 0.0
    %819 = vmatprep.subr.mxu0 0.0
    %820 = vmatpush1.msra.mxu0 0.0
    %821 = vmatprep.mubr.f32.mxu0 0.0
    %822 = vmatmul.mubr.f32.gmra.mrb[0].mxu0 %v755
    %v823 = vpop.f32.mrb[0].mxu0
    %v824 = vadd.f32 %v65, %v823
    %v825 = vpop.f32.mrb[0].mxu0
    %826 = vdwg.mxu0
    %s827 = scalar_lea.vmem %s0, 16
    %v828 = vld [vmem:[%s827] sm:$0xf]
    %v829 = vsub.f32 %v824, %v828
    %s830 = scalar_lea.vmem [#allocation6], 16
    %831 = vst.msk [vmem:[%s830] sm:$0xf] %vm222, %v829
    %v832 = vmul.f32 %v752, 0.5
    %833 = vmatprep.subr.mxu0 0.0
    %834 = vmatpush1.msra.mxu0 %v45
    %835 = vmatprep.subr.mxu0 0.0
    %836 = vmatpush1.msra.mxu0 %v46
    %837 = vmatprep.subr.mxu0 0.0
    %838 = vmatpush1.msra.mxu0 %v47
    %839 = vmatprep.subr.mxu0 0.0
    %840 = vmatpush1.msra.mxu0 %v48
    %841 = vmatprep.subr.mxu0 0.0
    %842 = vmatpush1.msra.mxu0 0.0
    %843 = vmatprep.subr.mxu0 0.0
    %844 = vmatpush1.msra.mxu0 0.0
    %845 = vmatprep.subr.mxu0 0.0
    %846 = vmatpush1.msra.mxu0 0.0
    %847 = vmatprep.subr.mxu0 0.0
    %848 = vmatpush1.msra.mxu0 0.0
    %849 = vmatprep.subr.mxu0 0.0
    %850 = vmatpush1.msra.mxu0 0.0
    %851 = vmatprep.subr.mxu0 0.0
    %852 = vmatpush1.msra.mxu0 0.0
    %853 = vmatprep.subr.mxu0 0.0
    %854 = vmatpush1.msra.mxu0 0.0
    %855 = vmatprep.subr.mxu0 0.0
    %856 = vmatpush1.msra.mxu0 0.0
    %857 = vmatprep.subr.mxu0 0.0
    %858 = vmatpush1.msra.mxu0 0.0
    %859 = vmatprep.subr.mxu0 0.0
    %860 = vmatpush1.msra.mxu0 0.0
    %861 = vmatprep.subr.mxu0 0.0
    %862 = vmatpush1.msra.mxu0 0.0
    %863 = vmatprep.subr.mxu0 0.0
    %864 = vmatpush1.msra.mxu0 0.0
    %865 = vmatprep.subr.mxu0 0.0
    %866 = vmatpush1.msra.mxu0 0.0
    %867 = vmatprep.subr.mxu0 0.0
    %868 = vmatpush1.msra.mxu0 0.0
    %869 = vmatprep.subr.mxu0 0.0
    %870 = vmatpush1.msra.mxu0 0.0
    %871 = vmatprep.subr.mxu0 0.0
    %872 = vmatpush1.msra.mxu0 0.0
    %873 = vmatprep.subr.mxu0 0.0
    %874 = vmatpush1.msra.mxu0 0.0
    %875 = vmatprep.subr.mxu0 0.0
    %876 = vmatpush1.msra.mxu0 0.0
    %877 = vmatprep.subr.mxu0 0.0
    %878 = vmatpush1.msra.mxu0 0.0
    %879 = vmatprep.subr.mxu0 0.0
    %880 = vmatpush1.msra.mxu0 0.0
    %881 = vmatprep.subr.mxu0 0.0
    %882 = vmatpush1.msra.mxu0 0.0
    %883 = vmatprep.subr.mxu0 0.0
    %884 = vmatpush1.msra.mxu0 0.0
    %885 = vmatprep.subr.mxu0 0.0
    %886 = vmatpush1.msra.mxu0 0.0
    %887 = vmatprep.subr.mxu0 0.0
    %888 = vmatpush1.msra.mxu0 0.0
    %889 = vmatprep.subr.mxu0 0.0
    %890 = vmatpush1.msra.mxu0 0.0
    %891 = vmatprep.subr.mxu0 0.0
    %892 = vmatpush1.msra.mxu0 0.0
    %893 = vmatprep.subr.mxu0 0.0
    %894 = vmatpush1.msra.mxu0 0.0
    %895 = vmatprep.subr.mxu0 0.0
    %896 = vmatpush1.msra.mxu0 0.0
    %897 = vmatprep.mubr.f32.mxu0 0.0
    %898 = vmatmul.mubr.f32.gmra.mrb[0].mxu0 %v755
    %v899 = vpop.f32.mrb[0].mxu0
    %v900 = vadd.f32 %v58, %v899
    %v901 = vpop.f32.mrb[0].mxu0
    %902 = vdwg.mxu0
    %v903 = vmul.f32 %v900, 0.5
    %v904 = vadd.f32 %v832, %v903
    %v905 = vtanh.pop %v904
    %v907 = vsel %vm70, %v905, 0
    %909 = vmatprep.subr.mxu0 0.0
    %910 = vmatpush1.msra.mxu0 %v49
    %911 = vmatprep.subr.mxu0 0.0
    %912 = vmatpush1.msra.mxu0 %v50
    %913 = vmatprep.subr.mxu0 0.0
    %914 = vmatpush1.msra.mxu0 %v51
    %915 = vmatprep.subr.mxu0 0.0
    %916 = vmatpush1.msra.mxu0 %v52
    %917 = vmatprep.subr.mxu0 0.0
    %918 = vmatpush1.msra.mxu0 0.0
    %919 = vmatprep.subr.mxu0 0.0
    %920 = vmatpush1.msra.mxu0 0.0
    %921 = vmatprep.subr.mxu0 0.0
    %922 = vmatpush1.msra.mxu0 0.0
    %923 = vmatprep.subr.mxu0 0.0
    %924 = vmatpush1.msra.mxu0 0.0
    %925 = vmatprep.subr.mxu0 0.0
    %926 = vmatpush1.msra.mxu0 0.0
    %927 = vmatprep.subr.mxu0 0.0
    %928 = vmatpush1.msra.mxu0 0.0
    %929 = vmatprep.subr.mxu0 0.0
    %930 = vmatpush1.msra.mxu0 0.0
    %931 = vmatprep.subr.mxu0 0.0
    %932 = vmatpush1.msra.mxu0 0.0
    %933 = vmatprep.subr.mxu0 0.0
    %934 = vmatpush1.msra.mxu0 0.0
    %935 = vmatprep.subr.mxu0 0.0
    %936 = vmatpush1.msra.mxu0 0.0
    %937 = vmatprep.subr.mxu0 0.0
    %938 = vmatpush1.msra.mxu0 0.0
    %939 = vmatprep.subr.mxu0 0.0
    %940 = vmatpush1.msra.mxu0 0.0
    %941 = vmatprep.subr.mxu0 0.0
    %942 = vmatpush1.msra.mxu0 0.0
    %943 = vmatprep.subr.mxu0 0.0
    %944 = vmatpush1.msra.mxu0 0.0
    %945 = vmatprep.subr.mxu0 0.0
    %946 = vmatpush1.msra.mxu0 0.0
    %947 = vmatprep.subr.mxu0 0.0
    %948 = vmatpush1.msra.mxu0 0.0
    %949 = vmatprep.subr.mxu0 0.0
    %950 = vmatpush1.msra.mxu0 0.0
    %951 = vmatprep.subr.mxu0 0.0
    %952 = vmatpush1.msra.mxu0 0.0
    %953 = vmatprep.subr.mxu0 0.0
    %954 = vmatpush1.msra.mxu0 0.0
    %955 = vmatprep.subr.mxu0 0.0
    %956 = vmatpush1.msra.mxu0 0.0
    %957 = vmatprep.subr.mxu0 0.0
    %958 = vmatpush1.msra.mxu0 0.0
    %959 = vmatprep.subr.mxu0 0.0
    %960 = vmatpush1.msra.mxu0 0.0
    %961 = vmatprep.subr.mxu0 0.0
    %962 = vmatpush1.msra.mxu0 0.0
    %963 = vmatprep.subr.mxu0 0.0
    %964 = vmatpush1.msra.mxu0 0.0
    %965 = vmatprep.subr.mxu0 0.0
    %966 = vmatpush1.msra.mxu0 0.0
    %967 = vmatprep.subr.mxu0 0.0
    %968 = vmatpush1.msra.mxu0 0.0
    %969 = vmatprep.subr.mxu0 0.0
    %970 = vmatpush1.msra.mxu0 0.0
    %971 = vmatprep.subr.mxu0 0.0
    %972 = vmatpush1.msra.mxu0 0.0
    %973 = vmatprep.mubr.f32.mxu0 0.0
    %974 = vmatmul.mubr.f32.gmra.mrb[0].mxu0 %v907
    %v975 = vpop.f32.mrb[0].mxu0
    %v976 = vadd.f32 %v65, %v975
    %v977 = vpop.f32.mrb[0].mxu0
    %978 = vdwg.mxu0
    %s979 = scalar_lea.vmem %s0, 20
    %v980 = vld [vmem:[%s979] sm:$0xf]
    %v981 = vsub.f32 %v976, %v980
    %s982 = scalar_lea.vmem [#allocation6], 20
    %983 = vst.msk [vmem:[%s982] sm:$0xf] %vm222, %v981
    %v984 = vmul.f32 %v904, 0.5
    %985 = vmatprep.subr.mxu0 0.0
    %986 = vmatpush1.msra.mxu0 %v45
    %987 = vmatprep.subr.mxu0 0.0
    %988 = vmatpush1.msra.mxu0 %v46
    %989 = vmatprep.subr.mxu0 0.0
    %990 = vmatpush1.msra.mxu0 %v47
    %991 = vmatprep.subr.mxu0 0.0
    %992 = vmatpush1.msra.mxu0 %v48
    %993 = vmatprep.subr.mxu0 0.0
    %994 = vmatpush1.msra.mxu0 0.0
    %995 = vmatprep.subr.mxu0 0.0
    %996 = vmatpush1.msra.mxu0 0.0
    %997 = vmatprep.subr.mxu0 0.0
    %998 = vmatpush1.msra.mxu0 0.0
    %999 = vmatprep.subr.mxu0 0.0
    %1000 = vmatpush1.msra.mxu0 0.0
    %1001 = vmatprep.subr.mxu0 0.0
    %1002 = vmatpush1.msra.mxu0 0.0
    %1003 = vmatprep.subr.mxu0 0.0
    %1004 = vmatpush1.msra.mxu0 0.0
    %1005 = vmatprep.subr.mxu0 0.0
    %1006 = vmatpush1.msra.mxu0 0.0
    %1007 = vmatprep.subr.mxu0 0.0
    %1008 = vmatpush1.msra.mxu0 0.0
    %1009 = vmatprep.subr.mxu0 0.0
    %1010 = vmatpush1.msra.mxu0 0.0
    %1011 = vmatprep.subr.mxu0 0.0
    %1012 = vmatpush1.msra.mxu0 0.0
    %1013 = vmatprep.subr.mxu0 0.0
    %1014 = vmatpush1.msra.mxu0 0.0
    %1015 = vmatprep.subr.mxu0 0.0
    %1016 = vmatpush1.msra.mxu0 0.0
    %1017 = vmatprep.subr.mxu0 0.0
    %1018 = vmatpush1.msra.mxu0 0.0
    %1019 = vmatprep.subr.mxu0 0.0
    %1020 = vmatpush1.msra.mxu0 0.0
    %1021 = vmatprep.subr.mxu0 0.0
    %1022 = vmatpush1.msra.mxu0 0.0
    %1023 = vmatprep.subr.mxu0 0.0
    %1024 = vmatpush1.msra.mxu0 0.0
    %1025 = vmatprep.subr.mxu0 0.0
    %1026 = vmatpush1.msra.mxu0 0.0
    %1027 = vmatprep.subr.mxu0 0.0
    %1028 = vmatpush1.msra.mxu0 0.0
    %1029 = vmatprep.subr.mxu0 0.0
    %1030 = vmatpush1.msra.mxu0 0.0
    %1031 = vmatprep.subr.mxu0 0.0
    %1032 = vmatpush1.msra.mxu0 0.0
    %1033 = vmatprep.subr.mxu0 0.0
    %1034 = vmatpush1.msra.mxu0 0.0
    %1035 = vmatprep.subr.mxu0 0.0
    %1036 = vmatpush1.msra.mxu0 0.0
    %1037 = vmatprep.subr.mxu0 0.0
    %1038 = vmatpush1.msra.mxu0 0.0
    %1039 = vmatprep.subr.mxu0 0.0
    %1040 = vmatpush1.msra.mxu0 0.0
    %1041 = vmatprep.subr.mxu0 0.0
    %1042 = vmatpush1.msra.mxu0 0.0
    %1043 = vmatprep.subr.mxu0 0.0
    %1044 = vmatpush1.msra.mxu0 0.0
    %1045 = vmatprep.subr.mxu0 0.0
    %1046 = vmatpush1.msra.mxu0 0.0
    %1047 = vmatprep.subr.mxu0 0.0
    %1048 = vmatpush1.msra.mxu0 0.0
    %1049 = vmatprep.mubr.f32.mxu0 0.0
    %1050 = vmatmul.mubr.f32.gmra.mrb[0].mxu0 %v907
    %v1051 = vpop.f32.mrb[0].mxu0
    %v1052 = vadd.f32 %v58, %v1051
    %v1053 = vpop.f32.mrb[0].mxu0
    %1054 = vdwg.mxu0
    %v1055 = vmul.f32 %v1052, 0.5
    %v1056 = vadd.f32 %v984, %v1055
    %v1057 = vtanh.pop %v1056
    %v1059 = vsel %vm70, %v1057, 0
    %1061 = vmatprep.subr.mxu0 0.0
    %1062 = vmatpush1.msra.mxu0 %v49
    %1063 = vmatprep.subr.mxu0 0.0
    %1064 = vmatpush1.msra.mxu0 %v50
    %1065 = vmatprep.subr.mxu0 0.0
    %1066 = vmatpush1.msra.mxu0 %v51
    %1067 = vmatprep.subr.mxu0 0.0
    %1068 = vmatpush1.msra.mxu0 %v52
    %1069 = vmatprep.subr.mxu0 0.0
    %1070 = vmatpush1.msra.mxu0 0.0
    %1071 = vmatprep.subr.mxu0 0.0
    %1072 = vmatpush1.msra.mxu0 0.0
    %1073 = vmatprep.subr.mxu0 0.0
    %1074 = vmatpush1.msra.mxu0 0.0
    %1075 = vmatprep.subr.mxu0 0.0
    %1076 = vmatpush1.msra.mxu0 0.0
    %1077 = vmatprep.subr.mxu0 0.0
    %1078 = vmatpush1.msra.mxu0 0.0
    %1079 = vmatprep.subr.mxu0 0.0
    %1080 = vmatpush1.msra.mxu0 0.0
    %1081 = vmatprep.subr.mxu0 0.0
    %1082 = vmatpush1.msra.mxu0 0.0
    %1083 = vmatprep.subr.mxu0 0.0
    %1084 = vmatpush1.msra.mxu0 0.0
    %1085 = vmatprep.subr.mxu0 0.0
    %1086 = vmatpush1.msra.mxu0 0.0
    %1087 = vmatprep.subr.mxu0 0.0
    %1088 = vmatpush1.msra.mxu0 0.0
    %1089 = vmatprep.subr.mxu0 0.0
    %1090 = vmatpush1.msra.mxu0 0.0
    %1091 = vmatprep.subr.mxu0 0.0
    %1092 = vmatpush1.msra.mxu0 0.0
    %1093 = vmatprep.subr.mxu0 0.0
    %1094 = vmatpush1.msra.mxu0 0.0
    %1095 = vmatprep.subr.mxu0 0.0
    %1096 = vmatpush1.msra.mxu0 0.0
    %1097 = vmatprep.subr.mxu0 0.0
    %1098 = vmatpush1.msra.mxu0 0.0
    %1099 = vmatprep.subr.mxu0 0.0
    %1100 = vmatpush1.msra.mxu0 0.0
    %1101 = vmatprep.subr.mxu0 0.0
    %1102 = vmatpush1.msra.mxu0 0.0
    %1103 = vmatprep.subr.mxu0 0.0
    %1104 = vmatpush1.msra.mxu0 0.0
    %1105 = vmatprep.subr.mxu0 0.0
    %1106 = vmatpush1.msra.mxu0 0.0
    %1107 = vmatprep.subr.mxu0 0.0
    %1108 = vmatpush1.msra.mxu0 0.0
    %1109 = vmatprep.subr.mxu0 0.0
    %1110 = vmatpush1.msra.mxu0 0.0
    %1111 = vmatprep.subr.mxu0 0.0
    %1112 = vmatpush1.msra.mxu0 0.0
    %1113 = vmatprep.subr.mxu0 0.0
    %1114 = vmatpush1.msra.mxu0 0.0
    %1115 = vmatprep.subr.mxu0 0.0
    %1116 = vmatpush1.msra.mxu0 0.0
    %1117 = vmatprep.subr.mxu0 0.0
    %1118 = vmatpush1.msra.mxu0 0.0
    %1119 = vmatprep.subr.mxu0 0.0
    %1120 = vmatpush1.msra.mxu0 0.0
    %1121 = vmatprep.subr.mxu0 0.0
    %1122 = vmatpush1.msra.mxu0 0.0
    %1123 = vmatprep.subr.mxu0 0.0
    %1124 = vmatpush1.msra.mxu0 0.0
    %1125 = vmatprep.mubr.f32.mxu0 0.0
    %1126 = vmatmul.mubr.f32.gmra.mrb[0].mxu0 %v1059
    %v1127 = vpop.f32.mrb[0].mxu0
    %v1128 = vadd.f32 %v65, %v1127
    %v1129 = vpop.f32.mrb[0].mxu0
    %1130 = vdwg.mxu0
    %s1131 = scalar_lea.vmem %s0, 24
    %v1132 = vld [vmem:[%s1131] sm:$0xf]
    %v1133 = vsub.f32 %v1128, %v1132
    %s1134 = scalar_lea.vmem [#allocation6], 24
    %1135 = vst.msk [vmem:[%s1134] sm:$0xf] %vm222, %v1133
    %v1136 = vmul.f32 %v1056, 0.5
    %1137 = vmatprep.subr.mxu0 0.0
    %1138 = vmatpush1.msra.mxu0 %v45
    %1139 = vmatprep.subr.mxu0 0.0
    %1140 = vmatpush1.msra.mxu0 %v46
    %1141 = vmatprep.subr.mxu0 0.0
    %1142 = vmatpush1.msra.mxu0 %v47
    %1143 = vmatprep.subr.mxu0 0.0
    %1144 = vmatpush1.msra.mxu0 %v48
    %1145 = vmatprep.subr.mxu0 0.0
    %1146 = vmatpush1.msra.mxu0 0.0
    %1147 = vmatprep.subr.mxu0 0.0
    %1148 = vmatpush1.msra.mxu0 0.0
    %1149 = vmatprep.subr.mxu0 0.0
    %1150 = vmatpush1.msra.mxu0 0.0
    %1151 = vmatprep.subr.mxu0 0.0
    %1152 = vmatpush1.msra.mxu0 0.0
    %1153 = vmatprep.subr.mxu0 0.0
    %1154 = vmatpush1.msra.mxu0 0.0
    %1155 = vmatprep.subr.mxu0 0.0
    %1156 = vmatpush1.msra.mxu0 0.0
    %1157 = vmatprep.subr.mxu0 0.0
    %1158 = vmatpush1.msra.mxu0 0.0
    %1159 = vmatprep.subr.mxu0 0.0
    %1160 = vmatpush1.msra.mxu0 0.0
    %1161 = vmatprep.subr.mxu0 0.0
    %1162 = vmatpush1.msra.mxu0 0.0
    %1163 = vmatprep.subr.mxu0 0.0
    %1164 = vmatpush1.msra.mxu0 0.0
    %1165 = vmatprep.subr.mxu0 0.0
    %1166 = vmatpush1.msra.mxu0 0.0
    %1167 = vmatprep.subr.mxu0 0.0
    %1168 = vmatpush1.msra.mxu0 0.0
    %1169 = vmatprep.subr.mxu0 0.0
    %1170 = vmatpush1.msra.mxu0 0.0
    %1171 = vmatprep.subr.mxu0 0.0
    %1172 = vmatpush1.msra.mxu0 0.0
    %1173 = vmatprep.subr.mxu0 0.0
    %1174 = vmatpush1.msra.mxu0 0.0
    %1175 = vmatprep.subr.mxu0 0.0
    %1176 = vmatpush1.msra.mxu0 0.0
    %1177 = vmatprep.subr.mxu0 0.0
    %1178 = vmatpush1.msra.mxu0 0.0
    %1179 = vmatprep.subr.mxu0 0.0
    %1180 = vmatpush1.msra.mxu0 0.0
    %1181 = vmatprep.subr.mxu0 0.0
    %1182 = vmatpush1.msra.mxu0 0.0
    %1183 = vmatprep.subr.mxu0 0.0
    %1184 = vmatpush1.msra.mxu0 0.0
    %1185 = vmatprep.subr.mxu0 0.0
    %1186 = vmatpush1.msra.mxu0 0.0
    %1187 = vmatprep.subr.mxu0 0.0
    %1188 = vmatpush1.msra.mxu0 0.0
    %1189 = vmatprep.subr.mxu0 0.0
    %1190 = vmatpush1.msra.mxu0 0.0
    %1191 = vmatprep.subr.mxu0 0.0
    %1192 = vmatpush1.msra.mxu0 0.0
    %1193 = vmatprep.subr.mxu0 0.0
    %1194 = vmatpush1.msra.mxu0 0.0
    %1195 = vmatprep.subr.mxu0 0.0
    %1196 = vmatpush1.msra.mxu0 0.0
    %1197 = vmatprep.subr.mxu0 0.0
    %1198 = vmatpush1.msra.mxu0 0.0
    %1199 = vmatprep.subr.mxu0 0.0
    %1200 = vmatpush1.msra.mxu0 0.0
    %1201 = vmatprep.mubr.f32.mxu0 0.0
    %1202 = vmatmul.mubr.f32.gmra.mrb[0].mxu0 %v1059
    %v1203 = vpop.f32.mrb[0].mxu0
    %v1204 = vadd.f32 %v58, %v1203
    %v1205 = vpop.f32.mrb[0].mxu0
    %1206 = vdwg.mxu0
    %v1207 = vmul.f32 %v1204, 0.5
    %v1208 = vadd.f32 %v1136, %v1207
    %v1209 = vtanh.pop %v1208
    %v1211 = vsel %vm70, %v1209, 0
    %1213 = vmatprep.subr.mxu0 0.0
    %1214 = vmatpush1.msra.mxu0 %v49
    %1215 = vmatprep.subr.mxu0 0.0
    %1216 = vmatpush1.msra.mxu0 %v50
    %1217 = vmatprep.subr.mxu0 0.0
    %1218 = vmatpush1.msra.mxu0 %v51
    %1219 = vmatprep.subr.mxu0 0.0
    %1220 = vmatpush1.msra.mxu0 %v52
    %1221 = vmatprep.subr.mxu0 0.0
    %1222 = vmatpush1.msra.mxu0 0.0
    %1223 = vmatprep.subr.mxu0 0.0
    %1224 = vmatpush1.msra.mxu0 0.0
    %1225 = vmatprep.subr.mxu0 0.0
    %1226 = vmatpush1.msra.mxu0 0.0
    %1227 = vmatprep.subr.mxu0 0.0
    %1228 = vmatpush1.msra.mxu0 0.0
    %1229 = vmatprep.subr.mxu0 0.0
    %1230 = vmatpush1.msra.mxu0 0.0
    %1231 = vmatprep.subr.mxu0 0.0
    %1232 = vmatpush1.msra.mxu0 0.0
    %1233 = vmatprep.subr.mxu0 0.0
    %1234 = vmatpush1.msra.mxu0 0.0
    %1235 = vmatprep.subr.mxu0 0.0
    %1236 = vmatpush1.msra.mxu0 0.0
    %1237 = vmatprep.subr.mxu0 0.0
    %1238 = vmatpush1.msra.mxu0 0.0
    %1239 = vmatprep.subr.mxu0 0.0
    %1240 = vmatpush1.msra.mxu0 0.0
    %1241 = vmatprep.subr.mxu0 0.0
    %1242 = vmatpush1.msra.mxu0 0.0
    %1243 = vmatprep.subr.mxu0 0.0
    %1244 = vmatpush1.msra.mxu0 0.0
    %1245 = vmatprep.subr.mxu0 0.0
    %1246 = vmatpush1.msra.mxu0 0.0
    %1247 = vmatprep.subr.mxu0 0.0
    %1248 = vmatpush1.msra.mxu0 0.0
    %1249 = vmatprep.subr.mxu0 0.0
    %1250 = vmatpush1.msra.mxu0 0.0
    %1251 = vmatprep.subr.mxu0 0.0
    %1252 = vmatpush1.msra.mxu0 0.0
    %1253 = vmatprep.subr.mxu0 0.0
    %1254 = vmatpush1.msra.mxu0 0.0
    %1255 = vmatprep.subr.mxu0 0.0
    %1256 = vmatpush1.msra.mxu0 0.0
    %1257 = vmatprep.subr.mxu0 0.0
    %1258 = vmatpush1.msra.mxu0 0.0
    %1259 = vmatprep.subr.mxu0 0.0
    %1260 = vmatpush1.msra.mxu0 0.0
    %1261 = vmatprep.subr.mxu0 0.0
    %1262 = vmatpush1.msra.mxu0 0.0
    %1263 = vmatprep.subr.mxu0 0.0
    %1264 = vmatpush1.msra.mxu0 0.0
    %1265 = vmatprep.subr.mxu0 0.0
    %1266 = vmatpush1.msra.mxu0 0.0
    %1267 = vmatprep.subr.mxu0 0.0
    %1268 = vmatpush1.msra.mxu0 0.0
    %1269 = vmatprep.subr.mxu0 0.0
    %1270 = vmatpush1.msra.mxu0 0.0
    %1271 = vmatprep.subr.mxu0 0.0
    %1272 = vmatpush1.msra.mxu0 0.0
    %1273 = vmatprep.subr.mxu0 0.0
    %1274 = vmatpush1.msra.mxu0 0.0
    %1275 = vmatprep.subr.mxu0 0.0
    %1276 = vmatpush1.msra.mxu0 0.0
    %1277 = vmatprep.mubr.f32.mxu0 0.0
    %1278 = vmatmul.mubr.f32.gmra.mrb[0].mxu0 %v1211
    %v1279 = vpop.f32.mrb[0].mxu0
    %v1280 = vadd.f32 %v65, %v1279
    %v1281 = vpop.f32.mrb[0].mxu0
    %1282 = vdwg.mxu0
    %s1283 = scalar_lea.vmem %s0, 28
    %v1284 = vld [vmem:[%s1283] sm:$0xf]
    %v1285 = vsub.f32 %v1280, %v1284
    %s1286 = scalar_lea.vmem [#allocation6], 28
    %1287 = vst.msk [vmem:[%s1286] sm:$0xf] %vm222, %v1285
    %vm1288 = vcmask 257024
    %1289 = vst.msk [vmem:[#allocation2] sm:$0xf] %vm1288, %v1208
    // Predicated region
    $region34: #{tpu_custom_call.1} parent=1 // pred_check
      _
    $region35: #{tpu_custom_call.1} parent=1 // pred_check_branch
      %1291 = sbr.rel (0) target = $region37
    $region36: #{tpu_custom_call.1} parent=1 // pred_region
      %s1293 = ssub.s32 512, 512
      %1294 = vsyncadd [#allocation5], %s1293
      %s1295 = sshll.u32 [#allocation6], 4
      %s1296 = int_to_ptr.vmem [resolvable:$true] %s1295
      %1301 = dma.vmem_to_hbm [thread:$0]  %s1296, 512, %s6, [#allocation5], 64, 64, 4
    $region37: #{tpu_custom_call.1} parent=1 // pred_fallthru
      _
    // Predicated region
    $region38: #{tpu_custom_call.1} parent=1 // pred_check
      _
    $region39: #{tpu_custom_call.1} parent=1 // pred_check_branch
      %1303 = sbr.rel (0) target = $region41
    $region40: #{tpu_custom_call.1} parent=1 // pred_region
      %1304 = dma.done [#allocation5], 512
    $region41: #{tpu_custom_call.1} parent=1 // pred_fallthru
      _
    %1305 = vsyncpa [#allocation4], 1
    %1306 = vsyncpa [#allocation5], 1

</llo_original>
